<compile_context>
chip_gen: v6e
topology: v6e:2x2x1
jax: 0.10.0
libtpu: 0.0.40
codegen_flags: <defaults>
</compile_context>

<pallas_src>
import jax
import jax.numpy as jnp
from jax.experimental import pallas as pl
from jax.experimental.pallas import tpu as pltpu


def _round_up(n, m):
    return -(-n // m) * m


# ---------------------------------------------------------------------------
# Parameter packing.
#   weight slab : [R_w, W_w]  f32, pieces transposed to [d_out, d_in], stacked
#                 at 8-aligned row offsets, lane offset always 0.
#   vector slab : [R_v, tile_b] f32, per-feature vectors (b / b_skip / gamma /
#                 beta / gate bias) pre-broadcast across the full lane tile.
# Slices inside the kernel are static Python ints.
# ---------------------------------------------------------------------------
def _pack_params(params, *, num_layers, dim_input, dim_hidden, num_scales,
                 flag_normalization, tile_b, dtype=jnp.float32):
    idx = 0
    w_pieces, w_off = [], 0
    v_pieces, v_off = [], 0

    def add_w(mat):
        nonlocal w_off
        mat = jnp.asarray(mat, dtype)
        r, c = int(mat.shape[0]), int(mat.shape[1])
        rp = _round_up(r, 8)
        spec = (w_off, r, c)
        w_pieces.append((mat, rp))
        w_off += rp
        return spec

    def add_v(vec):
        nonlocal v_off
        col = jnp.asarray(vec, dtype).reshape(-1, 1)          # [d, 1]
        d = int(col.shape[0])
        dp = _round_up(d, 8)
        tile = jnp.broadcast_to(col, (d, tile_b))              # pre-broadcast
        spec = (v_off, d)
        v_pieces.append((tile, dp))
        v_off += dp
        return spec

    layers = []
    for i in range(num_layers - 1):
        W, b = params[idx], params[idx + 1]
        idx += 2
        gamma = beta = None
        if flag_normalization:
            gamma, beta = params[idx], params[idx + 1]
            idx += 2
        layer = {}
        if i == 0 and dim_input != dim_hidden:
            Ws, bs = params[idx], params[idx + 1]
            idx += 2
            # Fuse main + skip projection rows -> one MXU push.
            layer["W_fused"] = add_w(
                jnp.concatenate([jnp.asarray(W, dtype).T,
                                 jnp.asarray(Ws, dtype).T], axis=0))
            layer["b"] = add_v(b)
            layer["b_skip"] = add_v(bs)
        else:
            layer["W"] = add_w(jnp.asarray(W, dtype).T)
            layer["b"] = add_v(b)
        if flag_normalization:
            layer["gamma"] = add_v(gamma)
            layer["beta"] = add_v(beta)
        layers.append(layer)

    Wg, bg = params[idx], params[idx + 1]
    gate = {"W": add_w(jnp.asarray(Wg, dtype).T), "b": add_v(bg)}

    w_width = max(_round_up(int(m.shape[1]), 128) for m, _ in w_pieces)
    w_slab = jnp.concatenate(
        [jnp.pad(m, ((0, rp - m.shape[0]), (0, w_width - m.shape[1])))
         for m, rp in w_pieces], axis=0)
    v_slab = jnp.concatenate(
        [jnp.pad(t, ((0, dp - t.shape[0]), (0, 0))) for t, dp in v_pieces],
        axis=0)
    return w_slab, v_slab, layers, gate


def _make_kernel(layers, gate, dim_hidden, flag_normalization, eps=1e-5):
    def read_w(ref, spec):                      # [rows, cols], lane offset 0
        off, r, c = spec
        return ref[off:off + r, 0:c]

    def read_v(ref, spec):                      # [d, tile_b], pre-broadcast
        off, d = spec
        return ref[off:off + d, :]

    def kernel(x_ref, w_ref, v_ref, out_ref):
        # One small in-kernel transpose -> feature-major, fully lane-dense.
        h = x_ref[...].astype(jnp.float32).T            # [d_in, tile_b]
        for layer in layers:
            if "W_fused" in layer:
                yy = jnp.dot(read_w(w_ref, layer["W_fused"]), h,
                             preferred_element_type=jnp.float32)
                y = yy[0:dim_hidden, :] + read_v(v_ref, layer["b"])
                skip = (yy[dim_hidden:2 * dim_hidden, :]
                        + read_v(v_ref, layer["b_skip"]))
            else:
                y = (jnp.dot(read_w(w_ref, layer["W"]), h,
                             preferred_element_type=jnp.float32)
                     + read_v(v_ref, layer["b"]))
                skip = h
            if flag_normalization:
                # LayerNorm over the feature (sublane) axis; var = E[y^2]-mu^2.
                mu = jnp.mean(y, axis=0, keepdims=True)
                var = jnp.mean(y * y, axis=0, keepdims=True) - mu * mu
                y = ((y - mu) * jax.lax.rsqrt(var + eps)
                     * read_v(v_ref, layer["gamma"])
                     + read_v(v_ref, layer["beta"]))
            y = jnp.maximum(y, 0.0)                      # ReLU activation
            h = y + skip

        # Gate linear + softmax over num_scales (sublane axis, exact division).
        logits = (jnp.dot(read_w(w_ref, gate["W"]), h,
                          preferred_element_type=jnp.float32)
                  + read_v(v_ref, gate["b"]))            # [num_scales, tile_b]
        logits = logits - jnp.max(logits, axis=0, keepdims=True)
        e = jnp.exp(logits)
        probs = e / jnp.sum(e, axis=0, keepdims=True)
        out_ref[...] = probs.T.astype(out_ref.dtype)     # [tile_b, num_scales]

    return kernel


def gate_unit_forward(x, params, *, num_layers, dim_input, dim_hidden,
                      num_scales, flag_normalization=True, tile_b=512):
    """x: [batch, dim_input] -> [batch, num_scales] (softmax gate weights)."""
    assert tile_b % 8 == 0
    B = x.shape[0]
    n_blocks = pl.cdiv(B, tile_b)                # partial edge block is fine

    w_slab, v_slab, layers, gate = _pack_params(
        params, num_layers=num_layers, dim_input=dim_input,
        dim_hidden=dim_hidden, num_scales=num_scales,
        flag_normalization=flag_normalization, tile_b=tile_b)

    kernel = _make_kernel(layers, gate, dim_hidden, flag_normalization)

    d0_out = 2 * dim_hidden if dim_input != dim_hidden else dim_hidden
    flops = 2 * B * (d0_out * dim_input
                     + (num_layers - 2) * dim_hidden * dim_hidden
                     + num_scales * dim_hidden)
    itemsize = jnp.dtype(x.dtype).itemsize
    bytes_accessed = int(B * dim_input * itemsize + B * num_scales * itemsize
                         + w_slab.size * 4 + v_slab.size * 4)

    out = pl.pallas_call(
        kernel,
        out_shape=jax.ShapeDtypeStruct((B, num_scales), x.dtype),
        grid_spec=pltpu.PrefetchScalarGridSpec(
            num_scalar_prefetch=0,
            grid=(n_blocks,),
            in_specs=[
                pl.BlockSpec((tile_b, dim_input), lambda i: (i, 0)),
                # Parameter slabs: constant index map -> fetched once.
                pl.BlockSpec(w_slab.shape, lambda i: (0, 0)),
                pl.BlockSpec(v_slab.shape, lambda i: (0, 0)),
            ],
            out_specs=pl.BlockSpec((tile_b, num_scales), lambda i: (i, 0)),
        ),
        compiler_params=pltpu.CompilerParams(
            dimension_semantics=("parallel",),       # megacore-shardable (v7x)
            vmem_limit_bytes=32 * 1024 * 1024),
        cost_estimate=pl.CostEstimate(
            flops=int(flops),
            transcendentals=int(B * (num_scales + num_layers)),
            bytes_accessed=bytes_accessed),
    )(x, w_slab, v_slab)
    return out


# ---------------------------------------------------------------------------
# Reference (pure JAX) + synthetic params.
# ---------------------------------------------------------------------------
def _layernorm_ref(h, gamma, beta, eps=1e-5):
    mu = jnp.mean(h, axis=-1, keepdims=True)
    var = jnp.mean((h - mu) ** 2, axis=-1, keepdims=True)
    return (h - mu) * jax.lax.rsqrt(var + eps) * gamma + beta


def init_params(key, num_layers, dim_input, dim_hidden, num_scales,
                flag_normalization=True):
    """Deterministic synthetic parameters, flat list in consumption order."""
    params = []
    for i in range(num_layers - 1):
        d_in = dim_input if i == 0 else dim_hidden
        key, k1, k2, k3, k4 = jax.random.split(key, 5)
        W = jax.random.normal(k1, (d_in, dim_hidden), jnp.float32) * 0.2
        b = jax.random.normal(k2, (1, dim_hidden), jnp.float32) * 0.1
        params += [W, b]
        if flag_normalization:
            gamma = jnp.ones((1, dim_hidden), jnp.float32) \
                + 0.05 * jax.random.normal(k3, (1, dim_hidden), jnp.float32)
            beta = 0.05 * jax.random.normal(k4, (1, dim_hidden), jnp.float32)
            params += [gamma, beta]
        if i == 0 and dim_input != dim_hidden:
            key, k5, k6 = jax.random.split(key, 3)
            Ws = jax.random.normal(k5, (d_in, dim_hidden), jnp.float32) * 0.2
            bs = jax.random.normal(k6, (1, dim_hidden), jnp.float32) * 0.1
            params += [Ws, bs]
    key, k7, k8 = jax.random.split(key, 3)
    Wg = jax.random.normal(k7, (dim_hidden, num_scales), jnp.float32) * 0.2
    bg = jax.random.normal(k8, (1, num_scales), jnp.float32) * 0.1
    params += [Wg, bg]
    return params


def reference_forward(x, params, *, num_layers, dim_input, dim_hidden,
                      num_scales, flag_normalization=True):
    """Pure-JAX reference matching the PyTorch module semantics."""
    idx = 0
    h = x.astype(jnp.float32)
    for i in range(num_layers - 1):
        x_in = h
        W, b = params[idx], params[idx + 1]
        idx += 2
        y = x_in @ W + b
        if flag_normalization:
            gamma, beta = params[idx], params[idx + 1]
            idx += 2
            y = _layernorm_ref(y, gamma, beta)
        y = jnp.maximum(y, 0.0)
        if i == 0 and dim_input != dim_hidden:
            Ws, bs = params[idx], params[idx + 1]
            idx += 2
            skip = x_in @ Ws + bs
        else:
            skip = x_in
        h = y + skip
    Wg, bg = params[idx], params[idx + 1]
    return jax.nn.softmax(h @ Wg + bg, axis=-1)


if __name__ == "__main__":
    def run_case(*, num_layers, dim_input, dim_hidden, num_scales, batch,
                 flag_normalization, tile_b):
        key = jax.random.PRNGKey(0)
        kx, kp = jax.random.split(key)
        x = jax.random.normal(kx, (batch, dim_input), jnp.float32)
        params = init_params(kp, num_layers, dim_input, dim_hidden, num_scales,
                             flag_normalization)
        out = gate_unit_forward(
            x, params, num_layers=num_layers, dim_input=dim_input,
            dim_hidden=dim_hidden, num_scales=num_scales,
            flag_normalization=flag_normalization, tile_b=tile_b)
        out = jax.block_until_ready(out)
        ref = reference_forward(
            x, params, num_layers=num_layers, dim_input=dim_input,
            dim_hidden=dim_hidden, num_scales=num_scales,
            flag_normalization=flag_normalization)
        assert out.shape == (batch, num_scales)
        err = float(jnp.max(jnp.abs(out - ref)))
        assert jnp.allclose(out, ref, atol=1e-4, rtol=1e-4), err

    # Case 1: dim_input != dim_hidden (fused skip projection), LayerNorm on,
    # batch not a multiple of tile_b (exercises the partial edge block),
    # grid of 2 steps (both v7x TensorCores busy).
    run_case(num_layers=3, dim_input=4, dim_hidden=32, num_scales=4,
             batch=1000, flag_normalization=True, tile_b=512)

    # Case 2: identity skip (dim_input == dim_hidden), no LayerNorm.
    run_case(num_layers=3, dim_input=32, dim_hidden=32, num_scales=4,
             batch=512, flag_normalization=False, tile_b=256)

    print("KERNEL_OK")
</pallas_src>

<mosaic_0001>
module attributes {stable_mosaic.version = 11 : i64} {
  func.func @kernel(%arg0: i32, %arg1: memref<512x4xf32, #tpu.memory_space<vmem>>, %arg2: memref<104x128xf32, #tpu.memory_space<vmem>>, %arg3: memref<232x512xf32, #tpu.memory_space<vmem>>, %arg4: memref<512x4xf32, #tpu.memory_space<vmem>>) attributes {dimension_semantics = [#tpu.dimension_semantics<parallel>], iteration_bounds = array<i64: 2>, scalar_prefetch = 0 : i64, scratch_operands = 0 : i64, tpu.core_type = #tpu.core_type<tc>, window_params = [{transform_indices = @transform_0, window_bounds = array<i64: 512, 4>}, {pipeline_mode = #tpu.pipeline_mode<synchronous>, transform_indices = @transform_1, window_bounds = array<i64: 104, 128>}, {pipeline_mode = #tpu.pipeline_mode<synchronous>, transform_indices = @transform_2, window_bounds = array<i64: 232, 512>}, {transform_indices = @transform_3, window_bounds = array<i64: 512, 4>}]} {
    %c0 = arith.constant 0 : index
    %c0_0 = arith.constant 0 : index
    %0 = vector.load %arg1[%c0, %c0_0] : memref<512x4xf32, #tpu.memory_space<vmem>>, vector<512x4xf32>
    %1 = tpu.transpose %0, [1, 0] : vector<512x4xf32> -> vector<4x512xf32>
    %c0_1 = arith.constant 0 : index
    %c0_2 = arith.constant 0 : index
    %2 = vector.load %arg2[%c0_1, %c0_2] : memref<104x128xf32, #tpu.memory_space<vmem>>, vector<64x4xf32>
    %cst = arith.constant dense<0.000000e+00> : vector<64x512xf32>
    %3 = tpu.matmul %2, %1, %cst {dimension_numbers = #tpu.dot_dimension_numbers<[1], [0], [0], [1], [0, 0, 1, 1], [], []>} : vector<64x4xf32>, vector<4x512xf32>, vector<64x512xf32> -> vector<64x512xf32>
    %4 = vector.extract_strided_slice %3 {offsets = [0, 0], sizes = [32, 512], strides = [1, 1]} : vector<64x512xf32> to vector<32x512xf32>
    %c0_3 = arith.constant 0 : index
    %c0_4 = arith.constant 0 : index
    %5 = vector.load %arg3[%c0_3, %c0_4] : memref<232x512xf32, #tpu.memory_space<vmem>>, vector<32x512xf32>
    %6 = arith.addf %4, %5 : vector<32x512xf32>
    %7 = vector.extract_strided_slice %3 {offsets = [32, 0], sizes = [32, 512], strides = [1, 1]} : vector<64x512xf32> to vector<32x512xf32>
    %c32 = arith.constant 32 : index
    %c0_5 = arith.constant 0 : index
    %8 = vector.load %arg3[%c32, %c0_5] : memref<232x512xf32, #tpu.memory_space<vmem>>, vector<32x512xf32>
    %9 = arith.addf %7, %8 : vector<32x512xf32>
    %cst_6 = arith.constant dense<0.000000e+00> : vector<512xf32>
    %10 = vector.multi_reduction <add>, %6, %cst_6 [0] : vector<32x512xf32> to vector<512xf32>
    %11 = vector.shape_cast %10 : vector<512xf32> to vector<1x512xf32>
    %cst_7 = arith.constant 3.200000e+01 : f32
    %12 = vector.broadcast %cst_7 : f32 to vector<1x512xf32>
    %13 = arith.divf %11, %12 : vector<1x512xf32>
    %14 = arith.mulf %6, %6 : vector<32x512xf32>
    %cst_8 = arith.constant dense<0.000000e+00> : vector<512xf32>
    %15 = vector.multi_reduction <add>, %14, %cst_8 [0] : vector<32x512xf32> to vector<512xf32>
    %16 = vector.shape_cast %15 : vector<512xf32> to vector<1x512xf32>
    %cst_9 = arith.constant 3.200000e+01 : f32
    %17 = vector.broadcast %cst_9 : f32 to vector<1x512xf32>
    %18 = arith.divf %16, %17 : vector<1x512xf32>
    %19 = arith.mulf %13, %13 : vector<1x512xf32>
    %20 = arith.subf %18, %19 : vector<1x512xf32>
    %21 = vector.broadcast %13 : vector<1x512xf32> to vector<32x512xf32>
    %22 = arith.subf %6, %21 : vector<32x512xf32>
    %cst_10 = arith.constant 9.99999974E-6 : f32
    %23 = vector.broadcast %cst_10 : f32 to vector<1x512xf32>
    %24 = arith.addf %20, %23 : vector<1x512xf32>
    %25 = math.rsqrt %24 : vector<1x512xf32>
    %26 = vector.broadcast %25 : vector<1x512xf32> to vector<32x512xf32>
    %27 = arith.mulf %22, %26 : vector<32x512xf32>
    %c64 = arith.constant 64 : index
    %c0_11 = arith.constant 0 : index
    %28 = vector.load %arg3[%c64, %c0_11] : memref<232x512xf32, #tpu.memory_space<vmem>>, vector<32x512xf32>
    %29 = arith.mulf %27, %28 : vector<32x512xf32>
    %c96 = arith.constant 96 : index
    %c0_12 = arith.constant 0 : index
    %30 = vector.load %arg3[%c96, %c0_12] : memref<232x512xf32, #tpu.memory_space<vmem>>, vector<32x512xf32>
    %31 = arith.addf %29, %30 : vector<32x512xf32>
    %cst_13 = arith.constant 0.000000e+00 : f32
    %32 = vector.broadcast %cst_13 : f32 to vector<32x512xf32>
    %33 = arith.maximumf %31, %32 : vector<32x512xf32>
    %34 = arith.addf %33, %9 : vector<32x512xf32>
    %c64_14 = arith.constant 64 : index
    %c0_15 = arith.constant 0 : index
    %35 = vector.load %arg2[%c64_14, %c0_15] : memref<104x128xf32, #tpu.memory_space<vmem>>, vector<32x32xf32>
    %cst_16 = arith.constant dense<0.000000e+00> : vector<32x512xf32>
    %36 = tpu.matmul %35, %34, %cst_16 {dimension_numbers = #tpu.dot_dimension_numbers<[1], [0], [0], [1], [0, 0, 1, 1], [], []>} : vector<32x32xf32>, vector<32x512xf32>, vector<32x512xf32> -> vector<32x512xf32>
    %c128 = arith.constant 128 : index
    %c0_17 = arith.constant 0 : index
    %37 = vector.load %arg3[%c128, %c0_17] : memref<232x512xf32, #tpu.memory_space<vmem>>, vector<32x512xf32>
    %38 = arith.addf %36, %37 : vector<32x512xf32>
    %cst_18 = arith.constant dense<0.000000e+00> : vector<512xf32>
    %39 = vector.multi_reduction <add>, %38, %cst_18 [0] : vector<32x512xf32> to vector<512xf32>
    %40 = vector.shape_cast %39 : vector<512xf32> to vector<1x512xf32>
    %cst_19 = arith.constant 3.200000e+01 : f32
    %41 = vector.broadcast %cst_19 : f32 to vector<1x512xf32>
    %42 = arith.divf %40, %41 : vector<1x512xf32>
    %43 = arith.mulf %38, %38 : vector<32x512xf32>
    %cst_20 = arith.constant dense<0.000000e+00> : vector<512xf32>
    %44 = vector.multi_reduction <add>, %43, %cst_20 [0] : vector<32x512xf32> to vector<512xf32>
    %45 = vector.shape_cast %44 : vector<512xf32> to vector<1x512xf32>
    %cst_21 = arith.constant 3.200000e+01 : f32
    %46 = vector.broadcast %cst_21 : f32 to vector<1x512xf32>
    %47 = arith.divf %45, %46 : vector<1x512xf32>
    %48 = arith.mulf %42, %42 : vector<1x512xf32>
    %49 = arith.subf %47, %48 : vector<1x512xf32>
    %50 = vector.broadcast %42 : vector<1x512xf32> to vector<32x512xf32>
    %51 = arith.subf %38, %50 : vector<32x512xf32>
    %cst_22 = arith.constant 9.99999974E-6 : f32
    %52 = vector.broadcast %cst_22 : f32 to vector<1x512xf32>
    %53 = arith.addf %49, %52 : vector<1x512xf32>
    %54 = math.rsqrt %53 : vector<1x512xf32>
    %55 = vector.broadcast %54 : vector<1x512xf32> to vector<32x512xf32>
    %56 = arith.mulf %51, %55 : vector<32x512xf32>
    %c160 = arith.constant 160 : index
    %c0_23 = arith.constant 0 : index
    %57 = vector.load %arg3[%c160, %c0_23] : memref<232x512xf32, #tpu.memory_space<vmem>>, vector<32x512xf32>
    %58 = arith.mulf %56, %57 : vector<32x512xf32>
    %c192 = arith.constant 192 : index
    %c0_24 = arith.constant 0 : index
    %59 = vector.load %arg3[%c192, %c0_24] : memref<232x512xf32, #tpu.memory_space<vmem>>, vector<32x512xf32>
    %60 = arith.addf %58, %59 : vector<32x512xf32>
    %cst_25 = arith.constant 0.000000e+00 : f32
    %61 = vector.broadcast %cst_25 : f32 to vector<32x512xf32>
    %62 = arith.maximumf %60, %61 : vector<32x512xf32>
    %63 = arith.addf %62, %34 : vector<32x512xf32>
    %c96_26 = arith.constant 96 : index
    %c0_27 = arith.constant 0 : index
    %64 = vector.load %arg2[%c96_26, %c0_27] : memref<104x128xf32, #tpu.memory_space<vmem>>, vector<4x32xf32>
    %cst_28 = arith.constant dense<0.000000e+00> : vector<4x512xf32>
    %65 = tpu.matmul %64, %63, %cst_28 {dimension_numbers = #tpu.dot_dimension_numbers<[1], [0], [0], [1], [0, 0, 1, 1], [], []>} : vector<4x32xf32>, vector<32x512xf32>, vector<4x512xf32> -> vector<4x512xf32>
    %c224 = arith.constant 224 : index
    %c0_29 = arith.constant 0 : index
    %66 = vector.load %arg3[%c224, %c0_29] : memref<232x512xf32, #tpu.memory_space<vmem>>, vector<4x512xf32>
    %67 = arith.addf %65, %66 : vector<4x512xf32>
    %cst_30 = arith.constant dense<0xFF800000> : vector<512xf32>
    %68 = vector.multi_reduction <maximumf>, %67, %cst_30 [0] : vector<4x512xf32> to vector<512xf32>
    %69 = vector.shape_cast %68 : vector<512xf32> to vector<1x512xf32>
    %70 = vector.broadcast %69 : vector<1x512xf32> to vector<4x512xf32>
    %71 = arith.subf %67, %70 : vector<4x512xf32>
    %72 = math.exp %71 : vector<4x512xf32>
    %cst_31 = arith.constant dense<0.000000e+00> : vector<512xf32>
    %73 = vector.multi_reduction <add>, %72, %cst_31 [0] : vector<4x512xf32> to vector<512xf32>
    %74 = vector.shape_cast %73 : vector<512xf32> to vector<1x512xf32>
    %75 = vector.broadcast %74 : vector<1x512xf32> to vector<4x512xf32>
    %76 = arith.divf %72, %75 : vector<4x512xf32>
    %77 = tpu.transpose %76, [1, 0] : vector<4x512xf32> -> vector<512x4xf32>
    %c0_32 = arith.constant 0 : index
    %c0_33 = arith.constant 0 : index
    %78 = vector.load %arg4[%c0_32, %c0_33] : memref<512x4xf32, #tpu.memory_space<vmem>>, vector<512x4xf32>
    tpu.vector_store %arg4[%c0_32, %c0_33], %77 {strides = array<i32>} : memref<512x4xf32, #tpu.memory_space<vmem>>, vector<512x4xf32>,
    return
  }
  func.func @transform_0(%arg0: i32) -> (i32, i32) {
    %c0_i32 = arith.constant 0 : i32
    %c0_i32_0 = arith.constant 0 : i32
    return %arg0, %c0_i32 : i32, i32
  }
  func.func @transform_1(%arg0: i32) -> (i32, i32) {
    %c0_i32 = arith.constant 0 : i32
    %c0_i32_0 = arith.constant 0 : i32
    %c0_i32_1 = arith.constant 0 : i32
    return %c0_i32, %c0_i32_0 : i32, i32
  }
  func.func @transform_2(%arg0: i32) -> (i32, i32) {
    %c0_i32 = arith.constant 0 : i32
    %c0_i32_0 = arith.constant 0 : i32
    %c0_i32_1 = arith.constant 0 : i32
    return %c0_i32, %c0_i32_0 : i32, i32
  }
  func.func @transform_3(%arg0: i32) -> (i32, i32) {
    %c0_i32 = arith.constant 0 : i32
    %c0_i32_0 = arith.constant 0 : i32
    return %arg0, %c0_i32 : i32, i32
  }
}

</mosaic_0001>

<llo_original>
// kernel: tpu_custom_call.1
$region0: #{tpu_custom_call.1}
  #allocation0 [shape = 'u32[]', space=smem, size = 0x4, offset = 0x4, fixed_abs, tag = 'smem constant byte address 0x4 - core index']
  #allocation1 [shape = 'u32[144,128]{1,0:T(1,128)}', space=vmem, size = 0x12000, scoped, tag = 'internal scratch']
  %s0 = inlined_call_operand.vmem [shape: f32[1000,4], index: 0, kind: input, shape index: {}]
  %s1 = inlined_call_operand.vmem [shape: f32[104,128], index: 1, kind: input, shape index: {}]
  %s2 = inlined_call_operand.vmem [shape: f32[232,512], index: 2, kind: input, shape index: {}]
  %s3 = inlined_call_operand.vmem [shape: f32[1000,4], index: 3, kind: output, shape index: {}]
  %s4 = sld [smem:[#allocation0]]
  $region93: #{tpu_custom_call.1} parent=0
    _
  %s6 = ssub.s32 1, %s4
  %s7 = scalar_select 0, %s6, %s4
  $region1: #{tpu_custom_call.1} parent=0
    #allocation2 [shape = 'u8[524288]{0}', space=vmem, size = 0x80000, scoped, tag = 'output window, operand 0']
    loop: start=0, step=1, limit=4
    $region2: #{tpu_custom_call.1} parent=1 // loop_pre_header
      _
    $region3: #{tpu_custom_call.1} parent=1 // loop_header
      %s9 = sphi 0, %s13
      %p10 = scmp.ge.s32.totalorder %s9, 4
      %s19 = sphi 0, %s21
      %s22 = sphi 0, %s19
      %s23 = sphi 0, %s22
      %s39 = sphi 0, %s23
      %s43 = sphi 0, %s43
      %s45 = sphi 0, %s43
      %s46 = sphi 0, %s45
      %s60 = sphi 0, %s46
      %s64 = sphi 0, %s64
      %s66 = sphi 0, %s64
      %s67 = sphi 0, %s66
      %s81 = sphi 0, %s67
      %s87 = sphi 0, %s89
      %s90 = sphi 0, %s87
      %s91 = sphi 0, %s90
      %s107 = sphi 0, %s91
    $region4: #{tpu_custom_call.1} parent=1 // loop_header_branch
      %12 = sbr.rel (%p10) target = $region8
    $region5: #{tpu_custom_call.1} parent=1 // loop_body
      %s14 = ssub.s32 %s9, 1
      %s15 = ssub.s32 %s9, 2
      %s16 = sadd.s32 %s9, 1
      %s17 = ssub.s32 %s9, %s16
      %p18 = scmp.eq.s32.totalorder %s17, 0
      %s20 = sadd.s32 %s19, 1
      %s21 = scalar_select %p18, %s19, %s20
      %p24 = pneg %p18
      %p25 = scmp.eq.s32.totalorder %s9, 1
      %p26 = por %p24, %p25
      %p27 = scmp.ne.s32.totalorder %s19, %s22
      %p28 = scmp.eq.s32.totalorder %s9, 0
      %p29 = por %p27, %p28
      %p30 = scmp.ne.s32.totalorder %s19, %s22
      %p31 = scmp.eq.s32.totalorder %s14, 1
      %p32 = por %p30, %p31
      %p33 = scmp.ne.s32.totalorder %s22, %s23
      %p34 = scmp.eq.s32.totalorder %s14, 0
      %p35 = por %p33, %p34
      %p36 = scmp.ne.s32.totalorder %s22, %s23
      %p37 = scmp.eq.s32.totalorder %s15, 1
      %p38 = por %p36, %p37
      %p40 = scmp.ne.s32.totalorder %s23, %s39
      %p41 = scmp.eq.s32.totalorder %s15, 0
      %p42 = por %p40, %p41
      %s44 = sadd.s32 %s43, 1
      %p47 = scmp.eq.s32.totalorder %s9, 1
      %p48 = scmp.ne.s32.totalorder %s43, %s45
      %p49 = scmp.eq.s32.totalorder %s9, 0
      %p50 = por %p48, %p49
      %p51 = scmp.ne.s32.totalorder %s43, %s45
      %p52 = scmp.eq.s32.totalorder %s14, 1
      %p53 = por %p51, %p52
      %p54 = scmp.ne.s32.totalorder %s45, %s46
      %p55 = scmp.eq.s32.totalorder %s14, 0
      %p56 = por %p54, %p55
      %p57 = scmp.ne.s32.totalorder %s45, %s46
      %p58 = scmp.eq.s32.totalorder %s15, 1
      %p59 = por %p57, %p58
      %p61 = scmp.ne.s32.totalorder %s46, %s60
      %p62 = scmp.eq.s32.totalorder %s15, 0
      %p63 = por %p61, %p62
      %s65 = sadd.s32 %s64, 1
      %p68 = scmp.eq.s32.totalorder %s9, 1
      %p69 = scmp.ne.s32.totalorder %s64, %s66
      %p70 = scmp.eq.s32.totalorder %s9, 0
      %p71 = por %p69, %p70
      %p72 = scmp.ne.s32.totalorder %s64, %s66
      %p73 = scmp.eq.s32.totalorder %s14, 1
      %p74 = por %p72, %p73
      %p75 = scmp.ne.s32.totalorder %s66, %s67
      %p76 = scmp.eq.s32.totalorder %s14, 0
      %p77 = por %p75, %p76
      %p78 = scmp.ne.s32.totalorder %s66, %s67
      %p79 = scmp.eq.s32.totalorder %s15, 1
      %p80 = por %p78, %p79
      %p82 = scmp.ne.s32.totalorder %s67, %s81
      %p83 = scmp.eq.s32.totalorder %s15, 0
      %p84 = por %p82, %p83
      %s85 = ssub.s32 %s9, %s16
      %p86 = scmp.eq.s32.totalorder %s85, 0
      %s88 = sadd.s32 %s87, 1
      %s89 = scalar_select %p86, %s87, %s88
      %p92 = pneg %p86
      %p93 = scmp.eq.s32.totalorder %s9, 1
      %p94 = por %p92, %p93
      %p95 = scmp.ne.s32.totalorder %s87, %s90
      %p96 = scmp.eq.s32.totalorder %s9, 0
      %p97 = por %p95, %p96
      %p98 = scmp.ne.s32.totalorder %s87, %s90
      %p99 = scmp.eq.s32.totalorder %s14, 1
      %p100 = por %p98, %p99
      %p101 = scmp.ne.s32.totalorder %s90, %s91
      %p102 = scmp.eq.s32.totalorder %s14, 0
      %p103 = por %p101, %p102
      %p104 = scmp.ne.s32.totalorder %s90, %s91
      %p105 = scmp.eq.s32.totalorder %s15, 1
      %p106 = por %p104, %p105
      %p108 = scmp.ne.s32.totalorder %s91, %s107
      %p109 = scmp.eq.s32.totalorder %s15, 0
      %p110 = por %p108, %p109
      %p111 = scmp.le.s32.totalorder 1, %s9
      %p112 = scmp.lt.s32.totalorder %s9, 3
      %p113 = pnand %p111, %p112
      %p114 = pneg %p113
      // Predicated region
      $region9: #{tpu_custom_call.1} parent=5 // pred_check
        _
      $region10: #{tpu_custom_call.1} parent=5 // pred_check_branch
        %116 = sbr.rel (%p113) target = $region12
      $region11: #{tpu_custom_call.1} parent=5 // pred_region
        %s117 = ssub.s32 %s9, 1
        // Predicated region
        $region13: #{tpu_custom_call.1} parent=11 // pred_check
          %p118 = pneg %p56
        $region14: #{tpu_custom_call.1} parent=11 // pred_check_branch
          %120 = sbr.rel (%p118) target = $region16
        $region15: #{tpu_custom_call.1} parent=11 // pred_region
          _
        $region16: #{tpu_custom_call.1} parent=11 // pred_fallthru
          _
        // Predicated region
        $region17: #{tpu_custom_call.1} parent=11 // pred_check
          %p121 = pneg %p77
        $region18: #{tpu_custom_call.1} parent=11 // pred_check_branch
          %123 = sbr.rel (%p121) target = $region20
        $region19: #{tpu_custom_call.1} parent=11 // pred_region
          _
        $region20: #{tpu_custom_call.1} parent=11 // pred_fallthru
          _
      $region12: #{tpu_custom_call.1} parent=5 // pred_fallthru
        _
      %p124 = scmp.lt.s32.totalorder %s9, 2
      // Predicated region
      $region21: #{tpu_custom_call.1} parent=5 // pred_check
        %p125 = pneg %p124
      $region22: #{tpu_custom_call.1} parent=5 // pred_check_branch
        %127 = sbr.rel (%p125) target = $region24
      $region23: #{tpu_custom_call.1} parent=5 // pred_region
        // Predicated region
        $region25: #{tpu_custom_call.1} parent=23 // pred_check
          %p128 = pneg %p29
        $region26: #{tpu_custom_call.1} parent=23 // pred_check_branch
          %130 = sbr.rel (%p128) target = $region28
        $region27: #{tpu_custom_call.1} parent=23 // pred_region
          %s131 = smul.u32 64, %s9
          %s132 = ssub.s32 125, %s131
          %p133 = scmp.lt.s32.totalorder %s132, 64
          %s134 = scalar_select %p133, %s132, 64
          %s135 = smul.u32 128, %s134
          %p136 = scmp.lt.s32.totalorder %s131, 124
          %s137 = scalar_select %p136, %s131, 124
          %s138 = smul.addr %s137, 8
          %s139 = scalar_lea.vmem %s0, %s138
          %s140 = smul.u32 64, %s9
          %s141 = ssub.s32 125, %s140
          %p142 = scmp.lt.s32.totalorder %s141, 64
          %s143 = scalar_select %p142, %s141, 64
          %s144 = smul.u32 128, %s143
        $region28: #{tpu_custom_call.1} parent=23 // pred_fallthru
          _
      $region24: #{tpu_custom_call.1} parent=5 // pred_fallthru
        _
      %p145 = scmp.le.s32.totalorder 1, %s9
      %p146 = scmp.lt.s32.totalorder %s9, 3
      %p147 = pnand %p145, %p146
      %p148 = pneg %p147
      // Predicated region
      $region29: #{tpu_custom_call.1} parent=5 // pred_check
        _
      $region30: #{tpu_custom_call.1} parent=5 // pred_check_branch
        %150 = sbr.rel (%p147) target = $region32
      $region31: #{tpu_custom_call.1} parent=5 // pred_region
        %s151 = ssub.s32 %s9, 1
        %s152 = smul.u32 64, %s14
        %s153 = ssub.s32 125, %s152
        %p154 = scmp.lt.s32.totalorder %s153, 64
        %s155 = scalar_select %p154, %s153, 64
        %s156 = smul.u32 128, %s155
        %p157 = scmp.lt.s32.totalorder %s152, 124
        %s158 = scalar_select %p157, %s152, 124
        %s159 = smul.addr %s158, 8
        %s160 = scalar_lea.vmem %s0, %s159
        %p161 = pneg %p35
        %p162 = pneg %p32
        %p163 = pneg %p56
        %p164 = pneg %p53
        %p165 = pneg %p77
        %p166 = pneg %p74
        %p167 = pneg %p103
        %p168 = pneg %p100
        %s169 = sand.u32 %s90, 1
        %s170 = sand.u32 %s90, 1
        %s171 = smul.addr %s170, 512
        %s172 = scalar_lea.vmem [#allocation2], %s171
        %s173 = smul.u32 64, %s14
        %s174 = ssub.s32 125, %s173
        %p175 = scmp.lt.s32.totalorder %s174, 64
        %s176 = scalar_select %p175, %s174, 64
        %s177 = smul.u32 128, %s176
        %p178 = scmp.lt.s32.totalorder %s173, 124
        %s179 = scalar_select %p178, %s173, 124
        %s180 = smul.addr %s179, 8
        %s181 = scalar_lea.vmem %s0, %s180
        %s182 = smul.u32 64, %s14
        %s183 = ssub.s32 125, %s182
        %p184 = scmp.lt.s32.totalorder %s183, 64
        %s185 = scalar_select %p184, %s183, 64
        %s186 = smul.u32 128, %s185
        %s187 = smul.u32 64, %s14
        %s188 = ssub.s32 125, %s187
        %p189 = scmp.lt.s32.totalorder %s188, 64
        %s190 = scalar_select %p189, %s188, 64
        %s191 = smul.u32 128, %s190
        %v192 = vld [vmem:[%s181] sm:$0xff]
        %v193 = vld [vmem:[%s181 + $0x8] sm:$0xff]
        %v194 = vld [vmem:[%s181 + $0x10] sm:$0xff]
        %v195 = vld [vmem:[%s181 + $0x18] sm:$0xff]
        %v196 = vld [vmem:[%s181 + $0x20] sm:$0xff]
        %v197 = vld [vmem:[%s181 + $0x28] sm:$0xff]
        %v198 = vld [vmem:[%s181 + $0x30] sm:$0xff]
        %v199 = vld [vmem:[%s181 + $0x38] sm:$0xff]
        %v200 = vld [vmem:[%s181 + $0x40] sm:$0xff]
        %v201 = vld [vmem:[%s181 + $0x48] sm:$0xff]
        %v202 = vld [vmem:[%s181 + $0x50] sm:$0xff]
        %v203 = vld [vmem:[%s181 + $0x58] sm:$0xff]
        %v204 = vld [vmem:[%s181 + $0x60] sm:$0xff]
        %v205 = vld [vmem:[%s181 + $0x68] sm:$0xff]
        %v206 = vld [vmem:[%s181 + $0x70] sm:$0xff]
        %v207 = vld [vmem:[%s181 + $0x78] sm:$0xff]
        %v208 = vld [vmem:[%s181 + $0x80] sm:$0xff]
        %v209 = vld [vmem:[%s181 + $0x88] sm:$0xff]
        %v210 = vld [vmem:[%s181 + $0x90] sm:$0xff]
        %v211 = vld [vmem:[%s181 + $0x98] sm:$0xff]
        %v212 = vld [vmem:[%s181 + $0xa0] sm:$0xff]
        %v213 = vld [vmem:[%s181 + $0xa8] sm:$0xff]
        %v214 = vld [vmem:[%s181 + $0xb0] sm:$0xff]
        %v215 = vld [vmem:[%s181 + $0xb8] sm:$0xff]
        %v216 = vld [vmem:[%s181 + $0xc0] sm:$0xff]
        %v217 = vld [vmem:[%s181 + $0xc8] sm:$0xff]
        %v218 = vld [vmem:[%s181 + $0xd0] sm:$0xff]
        %v219 = vld [vmem:[%s181 + $0xd8] sm:$0xff]
        %v220 = vld [vmem:[%s181 + $0xe0] sm:$0xff]
        %v221 = vld [vmem:[%s181 + $0xe8] sm:$0xff]
        %v222 = vld [vmem:[%s181 + $0xf0] sm:$0xff]
        %v223 = vld [vmem:[%s181 + $0xf8] sm:$0xff]
        %v224 = vld [vmem:[%s181 + $0x100] sm:$0xff]
        %v225 = vld [vmem:[%s181 + $0x108] sm:$0xff]
        %v226 = vld [vmem:[%s181 + $0x110] sm:$0xff]
        %v227 = vld [vmem:[%s181 + $0x118] sm:$0xff]
        %v228 = vld [vmem:[%s181 + $0x120] sm:$0xff]
        %v229 = vld [vmem:[%s181 + $0x128] sm:$0xff]
        %v230 = vld [vmem:[%s181 + $0x130] sm:$0xff]
        %v231 = vld [vmem:[%s181 + $0x138] sm:$0xff]
        %v232 = vld [vmem:[%s181 + $0x140] sm:$0xff]
        %v233 = vld [vmem:[%s181 + $0x148] sm:$0xff]
        %v234 = vld [vmem:[%s181 + $0x150] sm:$0xff]
        %v235 = vld [vmem:[%s181 + $0x158] sm:$0xff]
        %v236 = vld [vmem:[%s181 + $0x160] sm:$0xff]
        %v237 = vld [vmem:[%s181 + $0x168] sm:$0xff]
        %v238 = vld [vmem:[%s181 + $0x170] sm:$0xff]
        %v239 = vld [vmem:[%s181 + $0x178] sm:$0xff]
        %v240 = vld [vmem:[%s181 + $0x180] sm:$0xff]
        %v241 = vld [vmem:[%s181 + $0x188] sm:$0xff]
        %v242 = vld [vmem:[%s181 + $0x190] sm:$0xff]
        %v243 = vld [vmem:[%s181 + $0x198] sm:$0xff]
        %v244 = vld [vmem:[%s181 + $0x1a0] sm:$0xff]
        %v245 = vld [vmem:[%s181 + $0x1a8] sm:$0xff]
        %v246 = vld [vmem:[%s181 + $0x1b0] sm:$0xff]
        %v247 = vld [vmem:[%s181 + $0x1b8] sm:$0xff]
        %v248 = vld [vmem:[%s181 + $0x1c0] sm:$0xff]
        %v249 = vld [vmem:[%s181 + $0x1c8] sm:$0xff]
        %v250 = vld [vmem:[%s181 + $0x1d0] sm:$0xff]
        %v251 = vld [vmem:[%s181 + $0x1d8] sm:$0xff]
        %v252 = vld [vmem:[%s181 + $0x1e0] sm:$0xff]
        %v253 = vld [vmem:[%s181 + $0x1e8] sm:$0xff]
        %v254 = vld [vmem:[%s181 + $0x1f0] sm:$0xff]
        %v255 = vld [vmem:[%s181 + $0x1f8] sm:$0xff]
        %v256 = vld [vmem:[%s1] sm:$0xff]
        %v257 = vld [vmem:[%s1 + $0x8] sm:$0xff]
        %v258 = vld [vmem:[%s1 + $0x10] sm:$0xff]
        %v259 = vld [vmem:[%s1 + $0x18] sm:$0xff]
        %v260 = vld [vmem:[%s1 + $0x20] sm:$0xff]
        %v261 = vld [vmem:[%s1 + $0x28] sm:$0xff]
        %v262 = vld [vmem:[%s1 + $0x30] sm:$0xff]
        %v263 = vld [vmem:[%s1 + $0x38] sm:$0xff]
        %vm264 = vcmask 31744
        %v266 = vsel %vm264, %v256, 0
        %v269 = vsel %vm264, %v257, 0
        %v272 = vsel %vm264, %v258, 0
        %v275 = vsel %vm264, %v259, 0
        %v278 = vsel %vm264, %v260, 0
        %v281 = vsel %vm264, %v261, 0
        %v284 = vsel %vm264, %v262, 0
        %v287 = vsel %vm264, %v263, 0
        %v290 = vsel %vm264, %v192, 0
        %v293 = vsel %vm264, %v193, 0
        %v296 = vsel %vm264, %v194, 0
        %v299 = vsel %vm264, %v195, 0
        %v302 = vsel %vm264, %v196, 0
        %v305 = vsel %vm264, %v197, 0
        %v308 = vsel %vm264, %v198, 0
        %v311 = vsel %vm264, %v199, 0
        %v314 = vsel %vm264, %v200, 0
        %v317 = vsel %vm264, %v201, 0
        %v320 = vsel %vm264, %v202, 0
        %v323 = vsel %vm264, %v203, 0
        %v326 = vsel %vm264, %v204, 0
        %v329 = vsel %vm264, %v205, 0
        %v332 = vsel %vm264, %v206, 0
        %v335 = vsel %vm264, %v207, 0
        %v338 = vsel %vm264, %v208, 0
        %v341 = vsel %vm264, %v209, 0
        %v344 = vsel %vm264, %v210, 0
        %v347 = vsel %vm264, %v211, 0
        %v350 = vsel %vm264, %v212, 0
        %v353 = vsel %vm264, %v213, 0
        %v356 = vsel %vm264, %v214, 0
        %v359 = vsel %vm264, %v215, 0
        %v362 = vsel %vm264, %v216, 0
        %v365 = vsel %vm264, %v217, 0
        %v368 = vsel %vm264, %v218, 0
        %v371 = vsel %vm264, %v219, 0
        %v374 = vsel %vm264, %v220, 0
        %v377 = vsel %vm264, %v221, 0
        %v380 = vsel %vm264, %v222, 0
        %v383 = vsel %vm264, %v223, 0
        %v386 = vsel %vm264, %v224, 0
        %v389 = vsel %vm264, %v225, 0
        %v392 = vsel %vm264, %v226, 0
        %v395 = vsel %vm264, %v227, 0
        %v398 = vsel %vm264, %v228, 0
        %v401 = vsel %vm264, %v229, 0
        %v404 = vsel %vm264, %v230, 0
        %v407 = vsel %vm264, %v231, 0
        %v410 = vsel %vm264, %v232, 0
        %v413 = vsel %vm264, %v233, 0
        %v416 = vsel %vm264, %v234, 0
        %v419 = vsel %vm264, %v235, 0
        %v422 = vsel %vm264, %v236, 0
        %v425 = vsel %vm264, %v237, 0
        %v428 = vsel %vm264, %v238, 0
        %v431 = vsel %vm264, %v239, 0
        %v434 = vsel %vm264, %v240, 0
        %v437 = vsel %vm264, %v241, 0
        %v440 = vsel %vm264, %v242, 0
        %v443 = vsel %vm264, %v243, 0
        %v446 = vsel %vm264, %v244, 0
        %v449 = vsel %vm264, %v245, 0
        %v452 = vsel %vm264, %v246, 0
        %v455 = vsel %vm264, %v247, 0
        %v458 = vsel %vm264, %v248, 0
        %v461 = vsel %vm264, %v249, 0
        %v464 = vsel %vm264, %v250, 0
        %v467 = vsel %vm264, %v251, 0
        %v470 = vsel %vm264, %v252, 0
        %v473 = vsel %vm264, %v253, 0
        %v476 = vsel %vm264, %v254, 0
        %v479 = vsel %vm264, %v255, 0
        %481 = vmatprep.subr.mxu0 0.0
        %482 = vmatpush1.xpose.msra.mxu0 %v335
        %483 = vmatprep.subr.mxu0 0.0
        %484 = vmatpush1.xpose.msra.mxu0 %v332
        %485 = vmatprep.subr.mxu0 0.0
        %486 = vmatpush1.xpose.msra.mxu0 %v329
        %487 = vmatprep.subr.mxu0 0.0
        %488 = vmatpush1.xpose.msra.mxu0 %v326
        %489 = vmatprep.subr.mxu0 0.0
        %490 = vmatpush1.xpose.msra.mxu0 %v323
        %491 = vmatprep.subr.mxu0 0.0
        %492 = vmatpush1.xpose.msra.mxu0 %v320
        %493 = vmatprep.subr.mxu0 0.0
        %494 = vmatpush1.xpose.msra.mxu0 %v317
        %495 = vmatprep.subr.mxu0 0.0
        %496 = vmatpush1.xpose.msra.mxu0 %v314
        %497 = vmatprep.subr.mxu0 0.0
        %498 = vmatpush1.xpose.msra.mxu0 %v311
        %499 = vmatprep.subr.mxu0 0.0
        %500 = vmatpush1.xpose.msra.mxu0 %v308
        %501 = vmatprep.subr.mxu0 0.0
        %502 = vmatpush1.xpose.msra.mxu0 %v305
        %503 = vmatprep.subr.mxu0 0.0
        %504 = vmatpush1.xpose.msra.mxu0 %v302
        %505 = vmatprep.subr.mxu0 0.0
        %506 = vmatpush1.xpose.msra.mxu0 %v299
        %507 = vmatprep.subr.mxu0 0.0
        %508 = vmatpush1.xpose.msra.mxu0 %v296
        %509 = vmatprep.subr.mxu0 0.0
        %510 = vmatpush1.xpose.msra.mxu0 %v293
        %511 = vmatprep.subr.mxu0 0.0
        %512 = vmatpush1.xpose.msra.mxu0 %v290
        %513 = vmatprep.subr.mxu0 0.0
        %514 = vmatpush2.xpose.msra.mxu0 %v383
        %515 = vmatprep.subr.mxu0 0.0
        %516 = vmatpush2.xpose.msra.mxu0 %v380
        %517 = vmatprep.subr.mxu0 0.0
        %518 = vmatpush2.xpose.msra.mxu0 %v377
        %519 = vmatprep.subr.mxu0 0.0
        %520 = vmatpush2.xpose.msra.mxu0 %v374
        %521 = vmatprep.subr.mxu0 0.0
        %522 = vmatpush2.xpose.msra.mxu0 %v371
        %523 = vmatprep.subr.mxu0 0.0
        %524 = vmatpush2.xpose.msra.mxu0 %v368
        %525 = vmatprep.subr.mxu0 0.0
        %526 = vmatpush2.xpose.msra.mxu0 %v365
        %527 = vmatprep.subr.mxu0 0.0
        %528 = vmatpush2.xpose.msra.mxu0 %v362
        %529 = vmatprep.subr.mxu0 0.0
        %530 = vmatpush2.xpose.msra.mxu0 %v359
        %531 = vmatprep.subr.mxu0 0.0
        %532 = vmatpush2.xpose.msra.mxu0 %v356
        %533 = vmatprep.subr.mxu0 0.0
        %534 = vmatpush2.xpose.msra.mxu0 %v353
        %535 = vmatprep.subr.mxu0 0.0
        %536 = vmatpush2.xpose.msra.mxu0 %v350
        %537 = vmatprep.subr.mxu0 0.0
        %538 = vmatpush2.xpose.msra.mxu0 %v347
        %539 = vmatprep.subr.mxu0 0.0
        %540 = vmatpush2.xpose.msra.mxu0 %v344
        %541 = vmatprep.subr.mxu0 0.0
        %542 = vmatpush2.xpose.msra.mxu0 %v341
        %543 = vmatprep.subr.mxu0 0.0
        %544 = vmatpush2.xpose.msra.mxu0 %v338
        %545 = vmatprep.mubr.f32.mxu0 0.0
        %546 = vmatmul.mubr.f32.gmra.mxu0 %v266
        %v547 = vpop.f32.mrf.mxu0
        %v548 = vadd.f32 0.0, %v547
        %v549 = vpop.f32.mrf.mxu0
        %v550 = vadd.f32 0.0, %v549
        %551 = vmatprep.mubr.f32.mxu0 0.0
        %552 = vmatmul.mubr.f32.gmra.mxu0 %v269
        %v553 = vpop.f32.mrf.mxu0
        %v554 = vadd.f32 0.0, %v553
        %v555 = vpop.f32.mrf.mxu0
        %v556 = vadd.f32 0.0, %v555
        %557 = vmatprep.mubr.f32.mxu0 0.0
        %558 = vmatmul.mubr.f32.gmra.mxu0 %v272
        %v559 = vpop.f32.mrf.mxu0
        %v560 = vadd.f32 0.0, %v559
        %v561 = vpop.f32.mrf.mxu0
        %v562 = vadd.f32 0.0, %v561
        %563 = vmatprep.mubr.f32.mxu0 0.0
        %564 = vmatmul.mubr.f32.gmra.mxu0 %v275
        %v565 = vpop.f32.mrf.mxu0
        %v566 = vadd.f32 0.0, %v565
        %v567 = vpop.f32.mrf.mxu0
        %v568 = vadd.f32 0.0, %v567
        %569 = vmatprep.mubr.f32.mxu0 0.0
        %570 = vmatmul.mubr.f32.gmra.mxu0 %v278
        %v571 = vpop.f32.mrf.mxu0
        %v572 = vadd.f32 0.0, %v571
        %v573 = vpop.f32.mrf.mxu0
        %v574 = vadd.f32 0.0, %v573
        %575 = vmatprep.mubr.f32.mxu0 0.0
        %576 = vmatmul.mubr.f32.gmra.mxu0 %v281
        %v577 = vpop.f32.mrf.mxu0
        %v578 = vadd.f32 0.0, %v577
        %v579 = vpop.f32.mrf.mxu0
        %v580 = vadd.f32 0.0, %v579
        %581 = vmatprep.mubr.f32.mxu0 0.0
        %582 = vmatmul.mubr.f32.gmra.mxu0 %v284
        %v583 = vpop.f32.mrf.mxu0
        %v584 = vadd.f32 0.0, %v583
        %v585 = vpop.f32.mrf.mxu0
        %v586 = vadd.f32 0.0, %v585
        %587 = vmatprep.mubr.f32.mxu0 0.0
        %588 = vmatmul.mubr.f32.gmra.mxu0 %v287
        %v589 = vpop.f32.mrf.mxu0
        %v590 = vadd.f32 0.0, %v589
        %v591 = vpop.f32.mrf.mxu0
        %v592 = vadd.f32 0.0, %v591
        %593 = vdwg.mxu0
        %594 = vmatprep.subr.mxu0 0.0
        %595 = vmatpush1.xpose.msra.mxu0 %v431
        %596 = vmatprep.subr.mxu0 0.0
        %597 = vmatpush1.xpose.msra.mxu0 %v428
        %598 = vmatprep.subr.mxu0 0.0
        %599 = vmatpush1.xpose.msra.mxu0 %v425
        %600 = vmatprep.subr.mxu0 0.0
        %601 = vmatpush1.xpose.msra.mxu0 %v422
        %602 = vmatprep.subr.mxu0 0.0
        %603 = vmatpush1.xpose.msra.mxu0 %v419
        %604 = vmatprep.subr.mxu0 0.0
        %605 = vmatpush1.xpose.msra.mxu0 %v416
        %606 = vmatprep.subr.mxu0 0.0
        %607 = vmatpush1.xpose.msra.mxu0 %v413
        %608 = vmatprep.subr.mxu0 0.0
        %609 = vmatpush1.xpose.msra.mxu0 %v410
        %610 = vmatprep.subr.mxu0 0.0
        %611 = vmatpush1.xpose.msra.mxu0 %v407
        %612 = vmatprep.subr.mxu0 0.0
        %613 = vmatpush1.xpose.msra.mxu0 %v404
        %614 = vmatprep.subr.mxu0 0.0
        %615 = vmatpush1.xpose.msra.mxu0 %v401
        %616 = vmatprep.subr.mxu0 0.0
        %617 = vmatpush1.xpose.msra.mxu0 %v398
        %618 = vmatprep.subr.mxu0 0.0
        %619 = vmatpush1.xpose.msra.mxu0 %v395
        %620 = vmatprep.subr.mxu0 0.0
        %621 = vmatpush1.xpose.msra.mxu0 %v392
        %622 = vmatprep.subr.mxu0 0.0
        %623 = vmatpush1.xpose.msra.mxu0 %v389
        %624 = vmatprep.subr.mxu0 0.0
        %625 = vmatpush1.xpose.msra.mxu0 %v386
        %626 = vmatprep.subr.mxu0 0.0
        %627 = vmatpush2.xpose.msra.mxu0 %v479
        %628 = vmatprep.subr.mxu0 0.0
        %629 = vmatpush2.xpose.msra.mxu0 %v476
        %630 = vmatprep.subr.mxu0 0.0
        %631 = vmatpush2.xpose.msra.mxu0 %v473
        %632 = vmatprep.subr.mxu0 0.0
        %633 = vmatpush2.xpose.msra.mxu0 %v470
        %634 = vmatprep.subr.mxu0 0.0
        %635 = vmatpush2.xpose.msra.mxu0 %v467
        %636 = vmatprep.subr.mxu0 0.0
        %637 = vmatpush2.xpose.msra.mxu0 %v464
        %638 = vmatprep.subr.mxu0 0.0
        %639 = vmatpush2.xpose.msra.mxu0 %v461
        %640 = vmatprep.subr.mxu0 0.0
        %641 = vmatpush2.xpose.msra.mxu0 %v458
        %642 = vmatprep.subr.mxu0 0.0
        %643 = vmatpush2.xpose.msra.mxu0 %v455
        %644 = vmatprep.subr.mxu0 0.0
        %645 = vmatpush2.xpose.msra.mxu0 %v452
        %646 = vmatprep.subr.mxu0 0.0
        %647 = vmatpush2.xpose.msra.mxu0 %v449
        %648 = vmatprep.subr.mxu0 0.0
        %649 = vmatpush2.xpose.msra.mxu0 %v446
        %650 = vmatprep.subr.mxu0 0.0
        %651 = vmatpush2.xpose.msra.mxu0 %v443
        %652 = vmatprep.subr.mxu0 0.0
        %653 = vmatpush2.xpose.msra.mxu0 %v440
        %654 = vmatprep.subr.mxu0 0.0
        %655 = vmatpush2.xpose.msra.mxu0 %v437
        %656 = vmatprep.subr.mxu0 0.0
        %657 = vmatpush2.xpose.msra.mxu0 %v434
        %658 = vmatprep.mubr.f32.mxu0 0.0
        %659 = vmatmul.mubr.f32.gmra.mxu0 %v266
        %v660 = vpop.f32.mrf.mxu0
        %v661 = vadd.f32 0.0, %v660
        %v662 = vpop.f32.mrf.mxu0
        %v663 = vadd.f32 0.0, %v662
        %664 = vmatprep.mubr.f32.mxu0 0.0
        %665 = vmatmul.mubr.f32.gmra.mxu0 %v269
        %v666 = vpop.f32.mrf.mxu0
        %v667 = vadd.f32 0.0, %v666
        %v668 = vpop.f32.mrf.mxu0
        %v669 = vadd.f32 0.0, %v668
        %670 = vmatprep.mubr.f32.mxu0 0.0
        %671 = vmatmul.mubr.f32.gmra.mxu0 %v272
        %v672 = vpop.f32.mrf.mxu0
        %v673 = vadd.f32 0.0, %v672
        %v674 = vpop.f32.mrf.mxu0
        %v675 = vadd.f32 0.0, %v674
        %676 = vmatprep.mubr.f32.mxu0 0.0
        %677 = vmatmul.mubr.f32.gmra.mxu0 %v275
        %v678 = vpop.f32.mrf.mxu0
        %v679 = vadd.f32 0.0, %v678
        %v680 = vpop.f32.mrf.mxu0
        %v681 = vadd.f32 0.0, %v680
        %682 = vmatprep.mubr.f32.mxu0 0.0
        %683 = vmatmul.mubr.f32.gmra.mxu0 %v278
        %v684 = vpop.f32.mrf.mxu0
        %v685 = vadd.f32 0.0, %v684
        %v686 = vpop.f32.mrf.mxu0
        %v687 = vadd.f32 0.0, %v686
        %688 = vmatprep.mubr.f32.mxu0 0.0
        %689 = vmatmul.mubr.f32.gmra.mxu0 %v281
        %v690 = vpop.f32.mrf.mxu0
        %v691 = vadd.f32 0.0, %v690
        %v692 = vpop.f32.mrf.mxu0
        %v693 = vadd.f32 0.0, %v692
        %694 = vmatprep.mubr.f32.mxu0 0.0
        %695 = vmatmul.mubr.f32.gmra.mxu0 %v284
        %v696 = vpop.f32.mrf.mxu0
        %v697 = vadd.f32 0.0, %v696
        %v698 = vpop.f32.mrf.mxu0
        %v699 = vadd.f32 0.0, %v698
        %700 = vmatprep.mubr.f32.mxu0 0.0
        %701 = vmatmul.mubr.f32.gmra.mxu0 %v287
        %v702 = vpop.f32.mrf.mxu0
        %v703 = vadd.f32 0.0, %v702
        %v704 = vpop.f32.mrf.mxu0
        %v705 = vadd.f32 0.0, %v704
        %706 = vdwg.mxu0
        %v707 = vld [vmem:[%s2] sm:$0xff]
        %v708 = vld [vmem:[%s2 + $0x8] sm:$0xff]
        %v709 = vld [vmem:[%s2 + $0x10] sm:$0xff]
        %v710 = vld [vmem:[%s2 + $0x18] sm:$0xff]
        %v711 = vld [vmem:[%s2 + $0x20] sm:$0xff]
        %v712 = vld [vmem:[%s2 + $0x28] sm:$0xff]
        %v713 = vld [vmem:[%s2 + $0x30] sm:$0xff]
        %v714 = vld [vmem:[%s2 + $0x38] sm:$0xff]
        %v715 = vld [vmem:[%s2 + $0x40] sm:$0xff]
        %v716 = vld [vmem:[%s2 + $0x48] sm:$0xff]
        %v717 = vld [vmem:[%s2 + $0x50] sm:$0xff]
        %v718 = vld [vmem:[%s2 + $0x58] sm:$0xff]
        %v719 = vld [vmem:[%s2 + $0x60] sm:$0xff]
        %v720 = vld [vmem:[%s2 + $0x68] sm:$0xff]
        %v721 = vld [vmem:[%s2 + $0x70] sm:$0xff]
        %v722 = vld [vmem:[%s2 + $0x78] sm:$0xff]
        %v723 = vadd.f32 %v548, %v707
        %v724 = vadd.f32 %v550, %v708
        %v725 = vadd.f32 %v661, %v709
        %v726 = vadd.f32 %v663, %v710
        %v727 = vadd.f32 %v554, %v711
        %v728 = vadd.f32 %v556, %v712
        %v729 = vadd.f32 %v667, %v713
        %v730 = vadd.f32 %v669, %v714
        %v731 = vadd.f32 %v560, %v715
        %v732 = vadd.f32 %v562, %v716
        %v733 = vadd.f32 %v673, %v717
        %v734 = vadd.f32 %v675, %v718
        %v735 = vadd.f32 %v566, %v719
        %v736 = vadd.f32 %v568, %v720
        %v737 = vadd.f32 %v679, %v721
        %v738 = vadd.f32 %v681, %v722
        %v739 = vld [vmem:[%s2 + $0x80] sm:$0xff]
        %v740 = vld [vmem:[%s2 + $0x88] sm:$0xff]
        %v741 = vld [vmem:[%s2 + $0x90] sm:$0xff]
        %v742 = vld [vmem:[%s2 + $0x98] sm:$0xff]
        %v743 = vld [vmem:[%s2 + $0xa0] sm:$0xff]
        %v744 = vld [vmem:[%s2 + $0xa8] sm:$0xff]
        %v745 = vld [vmem:[%s2 + $0xb0] sm:$0xff]
        %v746 = vld [vmem:[%s2 + $0xb8] sm:$0xff]
        %v747 = vld [vmem:[%s2 + $0xc0] sm:$0xff]
        %v748 = vld [vmem:[%s2 + $0xc8] sm:$0xff]
        %v749 = vld [vmem:[%s2 + $0xd0] sm:$0xff]
        %v750 = vld [vmem:[%s2 + $0xd8] sm:$0xff]
        %v751 = vld [vmem:[%s2 + $0xe0] sm:$0xff]
        %v752 = vld [vmem:[%s2 + $0xe8] sm:$0xff]
        %v753 = vld [vmem:[%s2 + $0xf0] sm:$0xff]
        %v754 = vld [vmem:[%s2 + $0xf8] sm:$0xff]
        %v755 = vadd.f32 %v572, %v739
        %v756 = vadd.f32 %v574, %v740
        %v757 = vadd.f32 %v685, %v741
        %v758 = vadd.f32 %v687, %v742
        %v759 = vadd.f32 %v578, %v743
        %v760 = vadd.f32 %v580, %v744
        %v761 = vadd.f32 %v691, %v745
        %v762 = vadd.f32 %v693, %v746
        %v763 = vadd.f32 %v584, %v747
        %v764 = vadd.f32 %v586, %v748
        %v765 = vadd.f32 %v697, %v749
        %v766 = vadd.f32 %v699, %v750
        %v767 = vadd.f32 %v590, %v751
        %v768 = vadd.f32 %v592, %v752
        %v769 = vadd.f32 %v703, %v753
        %v770 = vadd.f32 %v705, %v754
        %v771 = vadd.f32 %v723, %v727
        %v772 = vadd.f32 %v771, %v731
        %v773 = vadd.f32 %v772, %v735
        %v774 = vrot.slane %v773, 4
        %v775 = vadd.f32 %v773, %v774
        %v776 = vrot.slane %v775, 2
        %v777 = vadd.f32 %v775, %v776
        %v778 = vrot.slane %v777, 1
        %v779 = vadd.f32 %v777, %v778
        %v780 = vadd.f32 %v724, %v728
        %v781 = vadd.f32 %v780, %v732
        %v782 = vadd.f32 %v781, %v736
        %v783 = vrot.slane %v782, 4
        %v784 = vadd.f32 %v782, %v783
        %v785 = vrot.slane %v784, 2
        %v786 = vadd.f32 %v784, %v785
        %v787 = vrot.slane %v786, 1
        %v788 = vadd.f32 %v786, %v787
        %v789 = vadd.f32 %v725, %v729
        %v790 = vadd.f32 %v789, %v733
        %v791 = vadd.f32 %v790, %v737
        %v792 = vrot.slane %v791, 4
        %v793 = vadd.f32 %v791, %v792
        %v794 = vrot.slane %v793, 2
        %v795 = vadd.f32 %v793, %v794
        %v796 = vrot.slane %v795, 1
        %v797 = vadd.f32 %v795, %v796
        %v798 = vadd.f32 %v726, %v730
        %v799 = vadd.f32 %v798, %v734
        %v800 = vadd.f32 %v799, %v738
        %v801 = vrot.slane %v800, 4
        %v802 = vadd.f32 %v800, %v801
        %v803 = vrot.slane %v802, 2
        %v804 = vadd.f32 %v802, %v803
        %v805 = vrot.slane %v804, 1
        %v806 = vadd.f32 %v804, %v805
        %v807 = vrcp.pop 32.0
        %v808 = vmul.f32 %v779, %v807
        %v809 = vmul.f32 %v788, %v807
        %v810 = vmul.f32 %v797, %v807
        %v811 = vmul.f32 %v806, %v807
        %v812 = vmul.f32 %v723, %v723
        %v813 = vmul.f32 %v724, %v724
        %v814 = vmul.f32 %v725, %v725
        %v815 = vmul.f32 %v726, %v726
        %v816 = vmul.f32 %v727, %v727
        %v817 = vmul.f32 %v728, %v728
        %v818 = vmul.f32 %v729, %v729
        %v819 = vmul.f32 %v730, %v730
        %v820 = vmul.f32 %v731, %v731
        %v821 = vmul.f32 %v732, %v732
        %v822 = vmul.f32 %v733, %v733
        %v823 = vmul.f32 %v734, %v734
        %v824 = vmul.f32 %v735, %v735
        %v825 = vmul.f32 %v736, %v736
        %v826 = vmul.f32 %v737, %v737
        %v827 = vmul.f32 %v738, %v738
        %v828 = vadd.f32 %v812, %v816
        %v829 = vadd.f32 %v828, %v820
        %v830 = vadd.f32 %v829, %v824
        %v831 = vrot.slane %v830, 4
        %v832 = vadd.f32 %v830, %v831
        %v833 = vrot.slane %v832, 2
        %v834 = vadd.f32 %v832, %v833
        %v835 = vrot.slane %v834, 1
        %v836 = vadd.f32 %v834, %v835
        %v837 = vadd.f32 %v813, %v817
        %v838 = vadd.f32 %v837, %v821
        %v839 = vadd.f32 %v838, %v825
        %v840 = vrot.slane %v839, 4
        %v841 = vadd.f32 %v839, %v840
        %v842 = vrot.slane %v841, 2
        %v843 = vadd.f32 %v841, %v842
        %v844 = vrot.slane %v843, 1
        %v845 = vadd.f32 %v843, %v844
        %v846 = vadd.f32 %v814, %v818
        %v847 = vadd.f32 %v846, %v822
        %v848 = vadd.f32 %v847, %v826
        %v849 = vrot.slane %v848, 4
        %v850 = vadd.f32 %v848, %v849
        %v851 = vrot.slane %v850, 2
        %v852 = vadd.f32 %v850, %v851
        %v853 = vrot.slane %v852, 1
        %v854 = vadd.f32 %v852, %v853
        %v855 = vadd.f32 %v815, %v819
        %v856 = vadd.f32 %v855, %v823
        %v857 = vadd.f32 %v856, %v827
        %v858 = vrot.slane %v857, 4
        %v859 = vadd.f32 %v857, %v858
        %v860 = vrot.slane %v859, 2
        %v861 = vadd.f32 %v859, %v860
        %v862 = vrot.slane %v861, 1
        %v863 = vadd.f32 %v861, %v862
        %v864 = vmul.f32 %v836, %v807
        %v865 = vmul.f32 %v845, %v807
        %v866 = vmul.f32 %v854, %v807
        %v867 = vmul.f32 %v863, %v807
        %v868 = vmul.f32 %v808, %v808
        %v869 = vmul.f32 %v809, %v809
        %v870 = vmul.f32 %v810, %v810
        %v871 = vmul.f32 %v811, %v811
        %v872 = vsub.f32 %v864, %v868
        %v873 = vsub.f32 %v865, %v869
        %v874 = vsub.f32 %v866, %v870
        %v875 = vsub.f32 %v867, %v871
        %v876 = vsub.f32 %v723, %v808
        %v877 = vsub.f32 %v724, %v809
        %v878 = vsub.f32 %v725, %v810
        %v879 = vsub.f32 %v726, %v811
        %v880 = vsub.f32 %v727, %v808
        %v881 = vsub.f32 %v728, %v809
        %v882 = vsub.f32 %v729, %v810
        %v883 = vsub.f32 %v730, %v811
        %v884 = vsub.f32 %v731, %v808
        %v885 = vsub.f32 %v732, %v809
        %v886 = vsub.f32 %v733, %v810
        %v887 = vsub.f32 %v734, %v811
        %v888 = vsub.f32 %v735, %v808
        %v889 = vsub.f32 %v736, %v809
        %v890 = vsub.f32 %v737, %v810
        %v891 = vsub.f32 %v738, %v811
        %v892 = vadd.f32 %v872, 1e-05
        %v893 = vadd.f32 %v873, 1e-05
        %v894 = vadd.f32 %v874, 1e-05
        %v895 = vadd.f32 %v875, 1e-05
        %v896 = vrsqrt.pop %v892
        %v897 = vrsqrt.pop %v893
        %v898 = vrsqrt.pop %v894
        %v899 = vrsqrt.pop %v895
        %v900 = vmul.f32 %v876, %v896
        %v901 = vmul.f32 %v877, %v897
        %v902 = vmul.f32 %v878, %v898
        %v903 = vmul.f32 %v879, %v899
        %v904 = vmul.f32 %v880, %v896
        %v905 = vmul.f32 %v881, %v897
        %v906 = vmul.f32 %v882, %v898
        %v907 = vmul.f32 %v883, %v899
        %v908 = vmul.f32 %v884, %v896
        %v909 = vmul.f32 %v885, %v897
        %v910 = vmul.f32 %v886, %v898
        %v911 = vmul.f32 %v887, %v899
        %v912 = vmul.f32 %v888, %v896
        %v913 = vmul.f32 %v889, %v897
        %v914 = vmul.f32 %v890, %v898
        %v915 = vmul.f32 %v891, %v899
        %v916 = vld [vmem:[%s2 + $0x100] sm:$0xff]
        %v917 = vld [vmem:[%s2 + $0x108] sm:$0xff]
        %v918 = vld [vmem:[%s2 + $0x110] sm:$0xff]
        %v919 = vld [vmem:[%s2 + $0x118] sm:$0xff]
        %v920 = vld [vmem:[%s2 + $0x120] sm:$0xff]
        %v921 = vld [vmem:[%s2 + $0x128] sm:$0xff]
        %v922 = vld [vmem:[%s2 + $0x130] sm:$0xff]
        %v923 = vld [vmem:[%s2 + $0x138] sm:$0xff]
        %v924 = vld [vmem:[%s2 + $0x140] sm:$0xff]
        %v925 = vld [vmem:[%s2 + $0x148] sm:$0xff]
        %v926 = vld [vmem:[%s2 + $0x150] sm:$0xff]
        %v927 = vld [vmem:[%s2 + $0x158] sm:$0xff]
        %v928 = vld [vmem:[%s2 + $0x160] sm:$0xff]
        %v929 = vld [vmem:[%s2 + $0x168] sm:$0xff]
        %v930 = vld [vmem:[%s2 + $0x170] sm:$0xff]
        %v931 = vld [vmem:[%s2 + $0x178] sm:$0xff]
        %v932 = vmul.f32 %v900, %v916
        %v933 = vmul.f32 %v901, %v917
        %v934 = vmul.f32 %v902, %v918
        %v935 = vmul.f32 %v903, %v919
        %v936 = vmul.f32 %v904, %v920
        %v937 = vmul.f32 %v905, %v921
        %v938 = vmul.f32 %v906, %v922
        %v939 = vmul.f32 %v907, %v923
        %v940 = vmul.f32 %v908, %v924
        %v941 = vmul.f32 %v909, %v925
        %v942 = vmul.f32 %v910, %v926
        %v943 = vmul.f32 %v911, %v927
        %v944 = vmul.f32 %v912, %v928
        %v945 = vmul.f32 %v913, %v929
        %v946 = vmul.f32 %v914, %v930
        %v947 = vmul.f32 %v915, %v931
        %v948 = vld [vmem:[%s2 + $0x180] sm:$0xff]
        %v949 = vld [vmem:[%s2 + $0x188] sm:$0xff]
        %v950 = vld [vmem:[%s2 + $0x190] sm:$0xff]
        %v951 = vld [vmem:[%s2 + $0x198] sm:$0xff]
        %v952 = vld [vmem:[%s2 + $0x1a0] sm:$0xff]
        %v953 = vld [vmem:[%s2 + $0x1a8] sm:$0xff]
        %v954 = vld [vmem:[%s2 + $0x1b0] sm:$0xff]
        %v955 = vld [vmem:[%s2 + $0x1b8] sm:$0xff]
        %v956 = vld [vmem:[%s2 + $0x1c0] sm:$0xff]
        %v957 = vld [vmem:[%s2 + $0x1c8] sm:$0xff]
        %v958 = vld [vmem:[%s2 + $0x1d0] sm:$0xff]
        %v959 = vld [vmem:[%s2 + $0x1d8] sm:$0xff]
        %v960 = vld [vmem:[%s2 + $0x1e0] sm:$0xff]
        %v961 = vld [vmem:[%s2 + $0x1e8] sm:$0xff]
        %v962 = vld [vmem:[%s2 + $0x1f0] sm:$0xff]
        %v963 = vld [vmem:[%s2 + $0x1f8] sm:$0xff]
        %v964 = vadd.f32 %v932, %v948
        %v965 = vadd.f32 %v933, %v949
        %v966 = vadd.f32 %v934, %v950
        %v967 = vadd.f32 %v935, %v951
        %v968 = vadd.f32 %v936, %v952
        %v969 = vadd.f32 %v937, %v953
        %v970 = vadd.f32 %v938, %v954
        %v971 = vadd.f32 %v939, %v955
        %v972 = vadd.f32 %v940, %v956
        %v973 = vadd.f32 %v941, %v957
        %v974 = vadd.f32 %v942, %v958
        %v975 = vadd.f32 %v943, %v959
        %v976 = vadd.f32 %v944, %v960
        %v977 = vadd.f32 %v945, %v961
        %v978 = vadd.f32 %v946, %v962
        %v979 = vadd.f32 %v947, %v963
        %v980 = vmax.f32 %v964, 0.0
        %v981 = vmax.f32 %v965, 0.0
        %v982 = vmax.f32 %v966, 0.0
        %v983 = vmax.f32 %v967, 0.0
        %v984 = vmax.f32 %v968, 0.0
        %v985 = vmax.f32 %v969, 0.0
        %v986 = vmax.f32 %v970, 0.0
        %v987 = vmax.f32 %v971, 0.0
        %v988 = vmax.f32 %v972, 0.0
        %v989 = vmax.f32 %v973, 0.0
        %v990 = vmax.f32 %v974, 0.0
        %v991 = vmax.f32 %v975, 0.0
        %v992 = vmax.f32 %v976, 0.0
        %v993 = vmax.f32 %v977, 0.0
        %v994 = vmax.f32 %v978, 0.0
        %v995 = vmax.f32 %v979, 0.0
        %v996 = vadd.f32 %v980, %v755
        %v997 = vadd.f32 %v981, %v756
        %v998 = vadd.f32 %v982, %v757
        %v999 = vadd.f32 %v983, %v758
        %v1000 = vadd.f32 %v984, %v759
        %v1001 = vadd.f32 %v985, %v760
        %v1002 = vadd.f32 %v986, %v761
        %v1003 = vadd.f32 %v987, %v762
        %v1004 = vadd.f32 %v988, %v763
        %v1005 = vadd.f32 %v989, %v764
        %v1006 = vadd.f32 %v990, %v765
        %v1007 = vadd.f32 %v991, %v766
        %v1008 = vadd.f32 %v992, %v767
        %v1009 = vadd.f32 %v993, %v768
        %v1010 = vadd.f32 %v994, %v769
        %v1011 = vadd.f32 %v995, %v770
        %v1012 = vld [vmem:[%s1 + $0x40] sm:$0xff]
        %v1013 = vld [vmem:[%s1 + $0x48] sm:$0xff]
        %v1014 = vld [vmem:[%s1 + $0x50] sm:$0xff]
        %v1015 = vld [vmem:[%s1 + $0x58] sm:$0xff]
        %v1016 = vld [vmem:[%s2 + $0x200] sm:$0xff]
        %v1017 = vld [vmem:[%s2 + $0x208] sm:$0xff]
        %v1018 = vld [vmem:[%s2 + $0x210] sm:$0xff]
        %v1019 = vld [vmem:[%s2 + $0x218] sm:$0xff]
        %v1020 = vld [vmem:[%s2 + $0x220] sm:$0xff]
        %v1021 = vld [vmem:[%s2 + $0x228] sm:$0xff]
        %v1022 = vld [vmem:[%s2 + $0x230] sm:$0xff]
        %v1023 = vld [vmem:[%s2 + $0x238] sm:$0xff]
        %v1024 = vld [vmem:[%s2 + $0x240] sm:$0xff]
        %v1025 = vld [vmem:[%s2 + $0x248] sm:$0xff]
        %v1026 = vld [vmem:[%s2 + $0x250] sm:$0xff]
        %v1027 = vld [vmem:[%s2 + $0x258] sm:$0xff]
        %v1028 = vld [vmem:[%s2 + $0x260] sm:$0xff]
        %v1029 = vld [vmem:[%s2 + $0x268] sm:$0xff]
        %v1030 = vld [vmem:[%s2 + $0x270] sm:$0xff]
        %v1031 = vld [vmem:[%s2 + $0x278] sm:$0xff]
        %vm1032 = vcmask 261120
        %v1034 = vsel %vm1032, %v1012, 0
        %v1037 = vsel %vm1032, %v1013, 0
        %v1040 = vsel %vm1032, %v1014, 0
        %v1043 = vsel %vm1032, %v1015, 0
        %1045 = vmatprep.subr.mxu0 0.0
        %1046 = vmatpush1.msra.mxu0 0.0
        %1047 = vmatprep.subr.mxu0 0.0
        %1048 = vmatpush1.msra.mxu0 0.0
        %1049 = vmatprep.subr.mxu0 0.0
        %1050 = vmatpush1.msra.mxu0 0.0
        %1051 = vmatprep.subr.mxu0 0.0
        %1052 = vmatpush1.msra.mxu0 0.0
        %1053 = vmatprep.subr.mxu0 0.0
        %1054 = vmatpush1.msra.mxu0 0.0
        %1055 = vmatprep.subr.mxu0 0.0
        %1056 = vmatpush1.msra.mxu0 0.0
        %1057 = vmatprep.subr.mxu0 0.0
        %1058 = vmatpush1.msra.mxu0 0.0
        %1059 = vmatprep.subr.mxu0 0.0
        %1060 = vmatpush1.msra.mxu0 0.0
        %1061 = vmatprep.subr.mxu0 0.0
        %1062 = vmatpush1.msra.mxu0 0.0
        %1063 = vmatprep.subr.mxu0 0.0
        %1064 = vmatpush1.msra.mxu0 0.0
        %1065 = vmatprep.subr.mxu0 0.0
        %1066 = vmatpush1.msra.mxu0 0.0
        %1067 = vmatprep.subr.mxu0 0.0
        %1068 = vmatpush1.msra.mxu0 0.0
        %1069 = vmatprep.subr.mxu0 %v1009
        %1070 = vmatpush1.msra.mxu0 %v1008
        %1071 = vmatprep.subr.mxu0 %v1005
        %1072 = vmatpush1.msra.mxu0 %v1004
        %1073 = vmatprep.subr.mxu0 %v1001
        %1074 = vmatpush1.msra.mxu0 %v1000
        %1075 = vmatprep.subr.mxu0 %v997
        %1076 = vmatpush1.msra.mxu0 %v996
        %1077 = vmatprep.subr.mxu0 0.0
        %1078 = vmatpush2.msra.mxu0 0.0
        %1079 = vmatprep.subr.mxu0 0.0
        %1080 = vmatpush2.msra.mxu0 0.0
        %1081 = vmatprep.subr.mxu0 0.0
        %1082 = vmatpush2.msra.mxu0 0.0
        %1083 = vmatprep.subr.mxu0 0.0
        %1084 = vmatpush2.msra.mxu0 0.0
        %1085 = vmatprep.subr.mxu0 0.0
        %1086 = vmatpush2.msra.mxu0 0.0
        %1087 = vmatprep.subr.mxu0 0.0
        %1088 = vmatpush2.msra.mxu0 0.0
        %1089 = vmatprep.subr.mxu0 0.0
        %1090 = vmatpush2.msra.mxu0 0.0
        %1091 = vmatprep.subr.mxu0 0.0
        %1092 = vmatpush2.msra.mxu0 0.0
        %1093 = vmatprep.subr.mxu0 0.0
        %1094 = vmatpush2.msra.mxu0 0.0
        %1095 = vmatprep.subr.mxu0 0.0
        %1096 = vmatpush2.msra.mxu0 0.0
        %1097 = vmatprep.subr.mxu0 0.0
        %1098 = vmatpush2.msra.mxu0 0.0
        %1099 = vmatprep.subr.mxu0 0.0
        %1100 = vmatpush2.msra.mxu0 0.0
        %1101 = vmatprep.subr.mxu0 0.0
        %1102 = vmatpush2.msra.mxu0 0.0
        %1103 = vmatprep.subr.mxu0 0.0
        %1104 = vmatpush2.msra.mxu0 0.0
        %1105 = vmatprep.subr.mxu0 0.0
        %1106 = vmatpush2.msra.mxu0 0.0
        %1107 = vmatprep.subr.mxu0 0.0
        %1108 = vmatpush2.msra.mxu0 0.0
        %1109 = vmatprep.mubr.f32.mxu0 0.0
        %1110 = vmatmul.mubr.f32.gmra.mxu0 %v1034
        %v1111 = vpop.f32.mrf.mxu0
        %v1112 = vadd.f32 %v1016, %v1111
        %v1113 = vpop.f32.mrf.mxu0
        %v1114 = vadd.f32 %v1017, %v1113
        %1115 = vmatprep.mubr.f32.mxu0 0.0
        %1116 = vmatmul.mubr.f32.gmra.mxu0 %v1037
        %v1117 = vpop.f32.mrf.mxu0
        %v1118 = vadd.f32 %v1020, %v1117
        %v1119 = vpop.f32.mrf.mxu0
        %v1120 = vadd.f32 %v1021, %v1119
        %1121 = vmatprep.mubr.f32.mxu0 0.0
        %1122 = vmatmul.mubr.f32.gmra.mxu0 %v1040
        %v1123 = vpop.f32.mrf.mxu0
        %v1124 = vadd.f32 %v1024, %v1123
        %v1125 = vpop.f32.mrf.mxu0
        %v1126 = vadd.f32 %v1025, %v1125
        %1127 = vmatprep.mubr.f32.mxu0 0.0
        %1128 = vmatmul.mubr.f32.gmra.mxu0 %v1043
        %v1129 = vpop.f32.mrf.mxu0
        %v1130 = vadd.f32 %v1028, %v1129
        %v1131 = vpop.f32.mrf.mxu0
        %v1132 = vadd.f32 %v1029, %v1131
        %1133 = vdwg.mxu0
        %1134 = vmatprep.subr.mxu0 0.0
        %1135 = vmatpush1.msra.mxu0 0.0
        %1136 = vmatprep.subr.mxu0 0.0
        %1137 = vmatpush1.msra.mxu0 0.0
        %1138 = vmatprep.subr.mxu0 0.0
        %1139 = vmatpush1.msra.mxu0 0.0
        %1140 = vmatprep.subr.mxu0 0.0
        %1141 = vmatpush1.msra.mxu0 0.0
        %1142 = vmatprep.subr.mxu0 0.0
        %1143 = vmatpush1.msra.mxu0 0.0
        %1144 = vmatprep.subr.mxu0 0.0
        %1145 = vmatpush1.msra.mxu0 0.0
        %1146 = vmatprep.subr.mxu0 0.0
        %1147 = vmatpush1.msra.mxu0 0.0
        %1148 = vmatprep.subr.mxu0 0.0
        %1149 = vmatpush1.msra.mxu0 0.0
        %1150 = vmatprep.subr.mxu0 0.0
        %1151 = vmatpush1.msra.mxu0 0.0
        %1152 = vmatprep.subr.mxu0 0.0
        %1153 = vmatpush1.msra.mxu0 0.0
        %1154 = vmatprep.subr.mxu0 0.0
        %1155 = vmatpush1.msra.mxu0 0.0
        %1156 = vmatprep.subr.mxu0 0.0
        %1157 = vmatpush1.msra.mxu0 0.0
        %1158 = vmatprep.subr.mxu0 %v1011
        %1159 = vmatpush1.msra.mxu0 %v1010
        %1160 = vmatprep.subr.mxu0 %v1007
        %1161 = vmatpush1.msra.mxu0 %v1006
        %1162 = vmatprep.subr.mxu0 %v1003
        %1163 = vmatpush1.msra.mxu0 %v1002
        %1164 = vmatprep.subr.mxu0 %v999
        %1165 = vmatpush1.msra.mxu0 %v998
        %1166 = vmatprep.subr.mxu0 0.0
        %1167 = vmatpush2.msra.mxu0 0.0
        %1168 = vmatprep.subr.mxu0 0.0
        %1169 = vmatpush2.msra.mxu0 0.0
        %1170 = vmatprep.subr.mxu0 0.0
        %1171 = vmatpush2.msra.mxu0 0.0
        %1172 = vmatprep.subr.mxu0 0.0
        %1173 = vmatpush2.msra.mxu0 0.0
        %1174 = vmatprep.subr.mxu0 0.0
        %1175 = vmatpush2.msra.mxu0 0.0
        %1176 = vmatprep.subr.mxu0 0.0
        %1177 = vmatpush2.msra.mxu0 0.0
        %1178 = vmatprep.subr.mxu0 0.0
        %1179 = vmatpush2.msra.mxu0 0.0
        %1180 = vmatprep.subr.mxu0 0.0
        %1181 = vmatpush2.msra.mxu0 0.0
        %1182 = vmatprep.subr.mxu0 0.0
        %1183 = vmatpush2.msra.mxu0 0.0
        %1184 = vmatprep.subr.mxu0 0.0
        %1185 = vmatpush2.msra.mxu0 0.0
        %1186 = vmatprep.subr.mxu0 0.0
        %1187 = vmatpush2.msra.mxu0 0.0
        %1188 = vmatprep.subr.mxu0 0.0
        %1189 = vmatpush2.msra.mxu0 0.0
        %1190 = vmatprep.subr.mxu0 0.0
        %1191 = vmatpush2.msra.mxu0 0.0
        %1192 = vmatprep.subr.mxu0 0.0
        %1193 = vmatpush2.msra.mxu0 0.0
        %1194 = vmatprep.subr.mxu0 0.0
        %1195 = vmatpush2.msra.mxu0 0.0
        %1196 = vmatprep.subr.mxu0 0.0
        %1197 = vmatpush2.msra.mxu0 0.0
        %1198 = vmatprep.mubr.f32.mxu0 0.0
        %1199 = vmatmul.mubr.f32.gmra.mxu0 %v1034
        %v1200 = vpop.f32.mrf.mxu0
        %v1201 = vadd.f32 %v1018, %v1200
        %v1202 = vpop.f32.mrf.mxu0
        %v1203 = vadd.f32 %v1019, %v1202
        %1204 = vmatprep.mubr.f32.mxu0 0.0
        %1205 = vmatmul.mubr.f32.gmra.mxu0 %v1037
        %v1206 = vpop.f32.mrf.mxu0
        %v1207 = vadd.f32 %v1022, %v1206
        %v1208 = vpop.f32.mrf.mxu0
        %v1209 = vadd.f32 %v1023, %v1208
        %1210 = vmatprep.mubr.f32.mxu0 0.0
        %1211 = vmatmul.mubr.f32.gmra.mxu0 %v1040
        %v1212 = vpop.f32.mrf.mxu0
        %v1213 = vadd.f32 %v1026, %v1212
        %v1214 = vpop.f32.mrf.mxu0
        %v1215 = vadd.f32 %v1027, %v1214
        %1216 = vmatprep.mubr.f32.mxu0 0.0
        %1217 = vmatmul.mubr.f32.gmra.mxu0 %v1043
        %v1218 = vpop.f32.mrf.mxu0
        %v1219 = vadd.f32 %v1030, %v1218
        %v1220 = vpop.f32.mrf.mxu0
        %v1221 = vadd.f32 %v1031, %v1220
        %1222 = vdwg.mxu0
        %v1223 = vadd.f32 %v1112, %v1118
        %v1224 = vadd.f32 %v1223, %v1124
        %v1225 = vadd.f32 %v1224, %v1130
        %v1226 = vrot.slane %v1225, 4
        %v1227 = vadd.f32 %v1225, %v1226
        %v1228 = vrot.slane %v1227, 2
        %v1229 = vadd.f32 %v1227, %v1228
        %v1230 = vrot.slane %v1229, 1
        %v1231 = vadd.f32 %v1229, %v1230
        %v1232 = vadd.f32 %v1114, %v1120
        %v1233 = vadd.f32 %v1232, %v1126
        %v1234 = vadd.f32 %v1233, %v1132
        %v1235 = vrot.slane %v1234, 4
        %v1236 = vadd.f32 %v1234, %v1235
        %v1237 = vrot.slane %v1236, 2
        %v1238 = vadd.f32 %v1236, %v1237
        %v1239 = vrot.slane %v1238, 1
        %v1240 = vadd.f32 %v1238, %v1239
        %v1241 = vadd.f32 %v1201, %v1207
        %v1242 = vadd.f32 %v1241, %v1213
        %v1243 = vadd.f32 %v1242, %v1219
        %v1244 = vrot.slane %v1243, 4
        %v1245 = vadd.f32 %v1243, %v1244
        %v1246 = vrot.slane %v1245, 2
        %v1247 = vadd.f32 %v1245, %v1246
        %v1248 = vrot.slane %v1247, 1
        %v1249 = vadd.f32 %v1247, %v1248
        %v1250 = vadd.f32 %v1203, %v1209
        %v1251 = vadd.f32 %v1250, %v1215
        %v1252 = vadd.f32 %v1251, %v1221
        %v1253 = vrot.slane %v1252, 4
        %v1254 = vadd.f32 %v1252, %v1253
        %v1255 = vrot.slane %v1254, 2
        %v1256 = vadd.f32 %v1254, %v1255
        %v1257 = vrot.slane %v1256, 1
        %v1258 = vadd.f32 %v1256, %v1257
        %v1259 = vmul.f32 %v1231, %v807
        %v1260 = vmul.f32 %v1240, %v807
        %v1261 = vmul.f32 %v1249, %v807
        %v1262 = vmul.f32 %v1258, %v807
        %v1263 = vmul.f32 %v1112, %v1112
        %v1264 = vmul.f32 %v1114, %v1114
        %v1265 = vmul.f32 %v1201, %v1201
        %v1266 = vmul.f32 %v1203, %v1203
        %v1267 = vmul.f32 %v1118, %v1118
        %v1268 = vmul.f32 %v1120, %v1120
        %v1269 = vmul.f32 %v1207, %v1207
        %v1270 = vmul.f32 %v1209, %v1209
        %v1271 = vmul.f32 %v1124, %v1124
        %v1272 = vmul.f32 %v1126, %v1126
        %v1273 = vmul.f32 %v1213, %v1213
        %v1274 = vmul.f32 %v1215, %v1215
        %v1275 = vmul.f32 %v1130, %v1130
        %v1276 = vmul.f32 %v1132, %v1132
        %v1277 = vmul.f32 %v1219, %v1219
        %v1278 = vmul.f32 %v1221, %v1221
        %v1279 = vadd.f32 %v1263, %v1267
        %v1280 = vadd.f32 %v1279, %v1271
        %v1281 = vadd.f32 %v1280, %v1275
        %v1282 = vrot.slane %v1281, 4
        %v1283 = vadd.f32 %v1281, %v1282
        %v1284 = vrot.slane %v1283, 2
        %v1285 = vadd.f32 %v1283, %v1284
        %v1286 = vrot.slane %v1285, 1
        %v1287 = vadd.f32 %v1285, %v1286
        %v1288 = vadd.f32 %v1264, %v1268
        %v1289 = vadd.f32 %v1288, %v1272
        %v1290 = vadd.f32 %v1289, %v1276
        %v1291 = vrot.slane %v1290, 4
        %v1292 = vadd.f32 %v1290, %v1291
        %v1293 = vrot.slane %v1292, 2
        %v1294 = vadd.f32 %v1292, %v1293
        %v1295 = vrot.slane %v1294, 1
        %v1296 = vadd.f32 %v1294, %v1295
        %v1297 = vadd.f32 %v1265, %v1269
        %v1298 = vadd.f32 %v1297, %v1273
        %v1299 = vadd.f32 %v1298, %v1277
        %v1300 = vrot.slane %v1299, 4
        %v1301 = vadd.f32 %v1299, %v1300
        %v1302 = vrot.slane %v1301, 2
        %v1303 = vadd.f32 %v1301, %v1302
        %v1304 = vrot.slane %v1303, 1
        %v1305 = vadd.f32 %v1303, %v1304
        %v1306 = vadd.f32 %v1266, %v1270
        %v1307 = vadd.f32 %v1306, %v1274
        %v1308 = vadd.f32 %v1307, %v1278
        %v1309 = vrot.slane %v1308, 4
        %v1310 = vadd.f32 %v1308, %v1309
        %v1311 = vrot.slane %v1310, 2
        %v1312 = vadd.f32 %v1310, %v1311
        %v1313 = vrot.slane %v1312, 1
        %v1314 = vadd.f32 %v1312, %v1313
        %v1315 = vmul.f32 %v1287, %v807
        %v1316 = vmul.f32 %v1296, %v807
        %v1317 = vmul.f32 %v1305, %v807
        %v1318 = vmul.f32 %v1314, %v807
        %v1319 = vmul.f32 %v1259, %v1259
        %v1320 = vmul.f32 %v1260, %v1260
        %v1321 = vmul.f32 %v1261, %v1261
        %v1322 = vmul.f32 %v1262, %v1262
        %v1323 = vsub.f32 %v1315, %v1319
        %v1324 = vsub.f32 %v1316, %v1320
        %v1325 = vsub.f32 %v1317, %v1321
        %v1326 = vsub.f32 %v1318, %v1322
        %v1327 = vsub.f32 %v1112, %v1259
        %v1328 = vsub.f32 %v1114, %v1260
        %v1329 = vsub.f32 %v1201, %v1261
        %v1330 = vsub.f32 %v1203, %v1262
        %v1331 = vsub.f32 %v1118, %v1259
        %v1332 = vsub.f32 %v1120, %v1260
        %v1333 = vsub.f32 %v1207, %v1261
        %v1334 = vsub.f32 %v1209, %v1262
        %v1335 = vsub.f32 %v1124, %v1259
        %v1336 = vsub.f32 %v1126, %v1260
        %v1337 = vsub.f32 %v1213, %v1261
        %v1338 = vsub.f32 %v1215, %v1262
        %v1339 = vsub.f32 %v1130, %v1259
        %v1340 = vsub.f32 %v1132, %v1260
        %v1341 = vsub.f32 %v1219, %v1261
        %v1342 = vsub.f32 %v1221, %v1262
        %v1343 = vadd.f32 %v1323, 1e-05
        %v1344 = vadd.f32 %v1324, 1e-05
        %v1345 = vadd.f32 %v1325, 1e-05
        %v1346 = vadd.f32 %v1326, 1e-05
        %v1347 = vrsqrt.pop %v1343
        %v1348 = vrsqrt.pop %v1344
        %v1349 = vrsqrt.pop %v1345
        %v1350 = vrsqrt.pop %v1346
        %v1351 = vmul.f32 %v1327, %v1347
        %v1352 = vmul.f32 %v1328, %v1348
        %v1353 = vmul.f32 %v1329, %v1349
        %v1354 = vmul.f32 %v1330, %v1350
        %v1355 = vmul.f32 %v1331, %v1347
        %v1356 = vmul.f32 %v1332, %v1348
        %v1357 = vmul.f32 %v1333, %v1349
        %v1358 = vmul.f32 %v1334, %v1350
        %v1359 = vmul.f32 %v1335, %v1347
        %v1360 = vmul.f32 %v1336, %v1348
        %v1361 = vmul.f32 %v1337, %v1349
        %v1362 = vmul.f32 %v1338, %v1350
        %v1363 = vmul.f32 %v1339, %v1347
        %v1364 = vmul.f32 %v1340, %v1348
        %v1365 = vmul.f32 %v1341, %v1349
        %v1366 = vmul.f32 %v1342, %v1350
        %v1367 = vld [vmem:[%s2 + $0x280] sm:$0xff]
        %v1368 = vld [vmem:[%s2 + $0x288] sm:$0xff]
        %v1369 = vld [vmem:[%s2 + $0x290] sm:$0xff]
        %v1370 = vld [vmem:[%s2 + $0x298] sm:$0xff]
        %v1371 = vld [vmem:[%s2 + $0x2a0] sm:$0xff]
        %v1372 = vld [vmem:[%s2 + $0x2a8] sm:$0xff]
        %v1373 = vld [vmem:[%s2 + $0x2b0] sm:$0xff]
        %v1374 = vld [vmem:[%s2 + $0x2b8] sm:$0xff]
        %v1375 = vld [vmem:[%s2 + $0x2c0] sm:$0xff]
        %v1376 = vld [vmem:[%s2 + $0x2c8] sm:$0xff]
        %v1377 = vld [vmem:[%s2 + $0x2d0] sm:$0xff]
        %v1378 = vld [vmem:[%s2 + $0x2d8] sm:$0xff]
        %v1379 = vld [vmem:[%s2 + $0x2e0] sm:$0xff]
        %v1380 = vld [vmem:[%s2 + $0x2e8] sm:$0xff]
        %v1381 = vld [vmem:[%s2 + $0x2f0] sm:$0xff]
        %v1382 = vld [vmem:[%s2 + $0x2f8] sm:$0xff]
        %v1383 = vmul.f32 %v1351, %v1367
        %v1384 = vmul.f32 %v1352, %v1368
        %v1385 = vmul.f32 %v1353, %v1369
        %v1386 = vmul.f32 %v1354, %v1370
        %v1387 = vmul.f32 %v1355, %v1371
        %v1388 = vmul.f32 %v1356, %v1372
        %v1389 = vmul.f32 %v1357, %v1373
        %v1390 = vmul.f32 %v1358, %v1374
        %v1391 = vmul.f32 %v1359, %v1375
        %v1392 = vmul.f32 %v1360, %v1376
        %v1393 = vmul.f32 %v1361, %v1377
        %v1394 = vmul.f32 %v1362, %v1378
        %v1395 = vmul.f32 %v1363, %v1379
        %v1396 = vmul.f32 %v1364, %v1380
        %v1397 = vmul.f32 %v1365, %v1381
        %v1398 = vmul.f32 %v1366, %v1382
        %v1399 = vld [vmem:[%s2 + $0x300] sm:$0xff]
        %v1400 = vld [vmem:[%s2 + $0x308] sm:$0xff]
        %v1401 = vld [vmem:[%s2 + $0x310] sm:$0xff]
        %v1402 = vld [vmem:[%s2 + $0x318] sm:$0xff]
        %v1403 = vld [vmem:[%s2 + $0x320] sm:$0xff]
        %v1404 = vld [vmem:[%s2 + $0x328] sm:$0xff]
        %v1405 = vld [vmem:[%s2 + $0x330] sm:$0xff]
        %v1406 = vld [vmem:[%s2 + $0x338] sm:$0xff]
        %v1407 = vld [vmem:[%s2 + $0x340] sm:$0xff]
        %v1408 = vld [vmem:[%s2 + $0x348] sm:$0xff]
        %v1409 = vld [vmem:[%s2 + $0x350] sm:$0xff]
        %v1410 = vld [vmem:[%s2 + $0x358] sm:$0xff]
        %v1411 = vld [vmem:[%s2 + $0x360] sm:$0xff]
        %v1412 = vld [vmem:[%s2 + $0x368] sm:$0xff]
        %v1413 = vld [vmem:[%s2 + $0x370] sm:$0xff]
        %v1414 = vld [vmem:[%s2 + $0x378] sm:$0xff]
        %v1415 = vadd.f32 %v1383, %v1399
        %v1416 = vadd.f32 %v1384, %v1400
        %v1417 = vadd.f32 %v1385, %v1401
        %v1418 = vadd.f32 %v1386, %v1402
        %v1419 = vadd.f32 %v1387, %v1403
        %v1420 = vadd.f32 %v1388, %v1404
        %v1421 = vadd.f32 %v1389, %v1405
        %v1422 = vadd.f32 %v1390, %v1406
        %v1423 = vadd.f32 %v1391, %v1407
        %v1424 = vadd.f32 %v1392, %v1408
        %v1425 = vadd.f32 %v1393, %v1409
        %v1426 = vadd.f32 %v1394, %v1410
        %v1427 = vadd.f32 %v1395, %v1411
        %v1428 = vadd.f32 %v1396, %v1412
        %v1429 = vadd.f32 %v1397, %v1413
        %v1430 = vadd.f32 %v1398, %v1414
        %v1431 = vmax.f32 %v1415, 0.0
        %v1432 = vmax.f32 %v1416, 0.0
        %v1433 = vmax.f32 %v1417, 0.0
        %v1434 = vmax.f32 %v1418, 0.0
        %v1435 = vmax.f32 %v1419, 0.0
        %v1436 = vmax.f32 %v1420, 0.0
        %v1437 = vmax.f32 %v1421, 0.0
        %v1438 = vmax.f32 %v1422, 0.0
        %v1439 = vmax.f32 %v1423, 0.0
        %v1440 = vmax.f32 %v1424, 0.0
        %v1441 = vmax.f32 %v1425, 0.0
        %v1442 = vmax.f32 %v1426, 0.0
        %v1443 = vmax.f32 %v1427, 0.0
        %v1444 = vmax.f32 %v1428, 0.0
        %v1445 = vmax.f32 %v1429, 0.0
        %v1446 = vmax.f32 %v1430, 0.0
        %v1447 = vadd.f32 %v1431, %v996
        %v1448 = vadd.f32 %v1432, %v997
        %v1449 = vadd.f32 %v1433, %v998
        %v1450 = vadd.f32 %v1434, %v999
        %v1451 = vadd.f32 %v1435, %v1000
        %v1452 = vadd.f32 %v1436, %v1001
        %v1453 = vadd.f32 %v1437, %v1002
        %v1454 = vadd.f32 %v1438, %v1003
        %v1455 = vadd.f32 %v1439, %v1004
        %v1456 = vadd.f32 %v1440, %v1005
        %v1457 = vadd.f32 %v1441, %v1006
        %v1458 = vadd.f32 %v1442, %v1007
        %v1459 = vadd.f32 %v1443, %v1008
        %v1460 = vadd.f32 %v1444, %v1009
        %v1461 = vadd.f32 %v1445, %v1010
        %v1462 = vadd.f32 %v1446, %v1011
        %v1463 = vld [vmem:[%s1 + $0x60] sm:$0xf]
        %v1464 = vld [vmem:[%s2 + $0x380] sm:$0xf]
        %v1465 = vld [vmem:[%s2 + $0x388] sm:$0xf]
        %v1466 = vld [vmem:[%s2 + $0x390] sm:$0xf]
        %v1467 = vld [vmem:[%s2 + $0x398] sm:$0xf]
        %v1469 = vsel %vm1032, %v1463, 0
        %1471 = vmatprep.subr.mxu0 0.0
        %1472 = vmatpush1.msra.mxu0 0.0
        %1473 = vmatprep.subr.mxu0 0.0
        %1474 = vmatpush1.msra.mxu0 0.0
        %1475 = vmatprep.subr.mxu0 0.0
        %1476 = vmatpush1.msra.mxu0 0.0
        %1477 = vmatprep.subr.mxu0 0.0
        %1478 = vmatpush1.msra.mxu0 0.0
        %1479 = vmatprep.subr.mxu0 0.0
        %1480 = vmatpush1.msra.mxu0 0.0
        %1481 = vmatprep.subr.mxu0 0.0
        %1482 = vmatpush1.msra.mxu0 0.0
        %1483 = vmatprep.subr.mxu0 0.0
        %1484 = vmatpush1.msra.mxu0 0.0
        %1485 = vmatprep.subr.mxu0 0.0
        %1486 = vmatpush1.msra.mxu0 0.0
        %1487 = vmatprep.subr.mxu0 0.0
        %1488 = vmatpush1.msra.mxu0 0.0
        %1489 = vmatprep.subr.mxu0 0.0
        %1490 = vmatpush1.msra.mxu0 0.0
        %1491 = vmatprep.subr.mxu0 0.0
        %1492 = vmatpush1.msra.mxu0 0.0
        %1493 = vmatprep.subr.mxu0 0.0
        %1494 = vmatpush1.msra.mxu0 0.0
        %1495 = vmatprep.subr.mxu0 %v1460
        %1496 = vmatpush1.msra.mxu0 %v1459
        %1497 = vmatprep.subr.mxu0 %v1456
        %1498 = vmatpush1.msra.mxu0 %v1455
        %1499 = vmatprep.subr.mxu0 %v1452
        %1500 = vmatpush1.msra.mxu0 %v1451
        %1501 = vmatprep.subr.mxu0 %v1448
        %1502 = vmatpush1.msra.mxu0 %v1447
        %1503 = vmatprep.subr.mxu0 0.0
        %1504 = vmatpush2.msra.mxu0 0.0
        %1505 = vmatprep.subr.mxu0 0.0
        %1506 = vmatpush2.msra.mxu0 0.0
        %1507 = vmatprep.subr.mxu0 0.0
        %1508 = vmatpush2.msra.mxu0 0.0
        %1509 = vmatprep.subr.mxu0 0.0
        %1510 = vmatpush2.msra.mxu0 0.0
        %1511 = vmatprep.subr.mxu0 0.0
        %1512 = vmatpush2.msra.mxu0 0.0
        %1513 = vmatprep.subr.mxu0 0.0
        %1514 = vmatpush2.msra.mxu0 0.0
        %1515 = vmatprep.subr.mxu0 0.0
        %1516 = vmatpush2.msra.mxu0 0.0
        %1517 = vmatprep.subr.mxu0 0.0
        %1518 = vmatpush2.msra.mxu0 0.0
        %1519 = vmatprep.subr.mxu0 0.0
        %1520 = vmatpush2.msra.mxu0 0.0
        %1521 = vmatprep.subr.mxu0 0.0
        %1522 = vmatpush2.msra.mxu0 0.0
        %1523 = vmatprep.subr.mxu0 0.0
        %1524 = vmatpush2.msra.mxu0 0.0
        %1525 = vmatprep.subr.mxu0 0.0
        %1526 = vmatpush2.msra.mxu0 0.0
        %1527 = vmatprep.subr.mxu0 0.0
        %1528 = vmatpush2.msra.mxu0 0.0
        %1529 = vmatprep.subr.mxu0 0.0
        %1530 = vmatpush2.msra.mxu0 0.0
        %1531 = vmatprep.subr.mxu0 0.0
        %1532 = vmatpush2.msra.mxu0 0.0
        %1533 = vmatprep.subr.mxu0 0.0
        %1534 = vmatpush2.msra.mxu0 0.0
        %1535 = vmatprep.mubr.f32.mxu0 0.0
        %1536 = vmatmul.mubr.f32.gmra.mxu0 %v1469
        %v1537 = vpop.f32.mrf.mxu0
        %v1538 = vadd.f32 %v1464, %v1537
        %v1539 = vpop.f32.mrf.mxu0
        %v1540 = vadd.f32 %v1465, %v1539
        %1541 = vdwg.mxu0
        %1542 = vmatprep.subr.mxu0 0.0
        %1543 = vmatpush1.msra.mxu0 0.0
        %1544 = vmatprep.subr.mxu0 0.0
        %1545 = vmatpush1.msra.mxu0 0.0
        %1546 = vmatprep.subr.mxu0 0.0
        %1547 = vmatpush1.msra.mxu0 0.0
        %1548 = vmatprep.subr.mxu0 0.0
        %1549 = vmatpush1.msra.mxu0 0.0
        %1550 = vmatprep.subr.mxu0 0.0
        %1551 = vmatpush1.msra.mxu0 0.0
        %1552 = vmatprep.subr.mxu0 0.0
        %1553 = vmatpush1.msra.mxu0 0.0
        %1554 = vmatprep.subr.mxu0 0.0
        %1555 = vmatpush1.msra.mxu0 0.0
        %1556 = vmatprep.subr.mxu0 0.0
        %1557 = vmatpush1.msra.mxu0 0.0
        %1558 = vmatprep.subr.mxu0 0.0
        %1559 = vmatpush1.msra.mxu0 0.0
        %1560 = vmatprep.subr.mxu0 0.0
        %1561 = vmatpush1.msra.mxu0 0.0
        %1562 = vmatprep.subr.mxu0 0.0
        %1563 = vmatpush1.msra.mxu0 0.0
        %1564 = vmatprep.subr.mxu0 0.0
        %1565 = vmatpush1.msra.mxu0 0.0
        %1566 = vmatprep.subr.mxu0 %v1462
        %1567 = vmatpush1.msra.mxu0 %v1461
        %1568 = vmatprep.subr.mxu0 %v1458
        %1569 = vmatpush1.msra.mxu0 %v1457
        %1570 = vmatprep.subr.mxu0 %v1454
        %1571 = vmatpush1.msra.mxu0 %v1453
        %1572 = vmatprep.subr.mxu0 %v1450
        %1573 = vmatpush1.msra.mxu0 %v1449
        %1574 = vmatprep.subr.mxu0 0.0
        %1575 = vmatpush2.msra.mxu0 0.0
        %1576 = vmatprep.subr.mxu0 0.0
        %1577 = vmatpush2.msra.mxu0 0.0
        %1578 = vmatprep.subr.mxu0 0.0
        %1579 = vmatpush2.msra.mxu0 0.0
        %1580 = vmatprep.subr.mxu0 0.0
        %1581 = vmatpush2.msra.mxu0 0.0
        %1582 = vmatprep.subr.mxu0 0.0
        %1583 = vmatpush2.msra.mxu0 0.0
        %1584 = vmatprep.subr.mxu0 0.0
        %1585 = vmatpush2.msra.mxu0 0.0
        %1586 = vmatprep.subr.mxu0 0.0
        %1587 = vmatpush2.msra.mxu0 0.0
        %1588 = vmatprep.subr.mxu0 0.0
        %1589 = vmatpush2.msra.mxu0 0.0
        %1590 = vmatprep.subr.mxu0 0.0
        %1591 = vmatpush2.msra.mxu0 0.0
        %1592 = vmatprep.subr.mxu0 0.0
        %1593 = vmatpush2.msra.mxu0 0.0
        %1594 = vmatprep.subr.mxu0 0.0
        %1595 = vmatpush2.msra.mxu0 0.0
        %1596 = vmatprep.subr.mxu0 0.0
        %1597 = vmatpush2.msra.mxu0 0.0
        %1598 = vmatprep.subr.mxu0 0.0
        %1599 = vmatpush2.msra.mxu0 0.0
        %1600 = vmatprep.subr.mxu0 0.0
        %1601 = vmatpush2.msra.mxu0 0.0
        %1602 = vmatprep.subr.mxu0 0.0
        %1603 = vmatpush2.msra.mxu0 0.0
        %1604 = vmatprep.subr.mxu0 0.0
        %1605 = vmatpush2.msra.mxu0 0.0
        %1606 = vmatprep.mubr.f32.mxu0 0.0
        %1607 = vmatmul.mubr.f32.gmra.mxu0 %v1469
        %v1608 = vpop.f32.mrf.mxu0
        %v1609 = vadd.f32 %v1466, %v1608
        %v1610 = vpop.f32.mrf.mxu0
        %v1611 = vadd.f32 %v1467, %v1610
        %1612 = vdwg.mxu0
        %vm1613 = vcmask 1043456
        %v1614 = vsel %vm1613, %v1538, -inf
        %v1615 = vrot.slane %v1614, 4
        %v1616 = vmax.f32 %v1614, %v1615
        %v1617 = vrot.slane %v1616, 2
        %v1618 = vmax.f32 %v1616, %v1617
        %v1619 = vrot.slane %v1618, 1
        %v1620 = vmax.f32 %v1618, %v1619
        %v1621 = vsel %vm1613, %v1540, -inf
        %v1622 = vrot.slane %v1621, 4
        %v1623 = vmax.f32 %v1621, %v1622
        %v1624 = vrot.slane %v1623, 2
        %v1625 = vmax.f32 %v1623, %v1624
        %v1626 = vrot.slane %v1625, 1
        %v1627 = vmax.f32 %v1625, %v1626
        %v1628 = vsel %vm1613, %v1609, -inf
        %v1629 = vrot.slane %v1628, 4
        %v1630 = vmax.f32 %v1628, %v1629
        %v1631 = vrot.slane %v1630, 2
        %v1632 = vmax.f32 %v1630, %v1631
        %v1633 = vrot.slane %v1632, 1
        %v1634 = vmax.f32 %v1632, %v1633
        %v1635 = vsel %vm1613, %v1611, -inf
        %v1636 = vrot.slane %v1635, 4
        %v1637 = vmax.f32 %v1635, %v1636
        %v1638 = vrot.slane %v1637, 2
        %v1639 = vmax.f32 %v1637, %v1638
        %v1640 = vrot.slane %v1639, 1
        %v1641 = vmax.f32 %v1639, %v1640
        %v1642 = vsub.f32 %v1538, %v1620
        %v1643 = vsub.f32 %v1540, %v1627
        %v1644 = vsub.f32 %v1609, %v1634
        %v1645 = vsub.f32 %v1611, %v1641
        %v1646 = vmul.f32 %v1642, 1.442695
        %v1647 = vpow.pop %v1646
        %v1648 = vmul.f32 %v1643, 1.442695
        %v1649 = vpow.pop %v1648
        %v1650 = vmul.f32 %v1644, 1.442695
        %v1651 = vpow.pop %v1650
        %v1652 = vmul.f32 %v1645, 1.442695
        %v1653 = vpow.pop %v1652
        %v1654 = vsel %vm1613, %v1647, 0.0
        %v1655 = vrot.slane %v1654, 4
        %v1656 = vadd.f32 %v1654, %v1655
        %v1657 = vrot.slane %v1656, 2
        %v1658 = vadd.f32 %v1656, %v1657
        %v1659 = vrot.slane %v1658, 1
        %v1660 = vadd.f32 %v1658, %v1659
        %v1661 = vsel %vm1613, %v1649, 0.0
        %v1662 = vrot.slane %v1661, 4
        %v1663 = vadd.f32 %v1661, %v1662
        %v1664 = vrot.slane %v1663, 2
        %v1665 = vadd.f32 %v1663, %v1664
        %v1666 = vrot.slane %v1665, 1
        %v1667 = vadd.f32 %v1665, %v1666
        %v1668 = vsel %vm1613, %v1651, 0.0
        %v1669 = vrot.slane %v1668, 4
        %v1670 = vadd.f32 %v1668, %v1669
        %v1671 = vrot.slane %v1670, 2
        %v1672 = vadd.f32 %v1670, %v1671
        %v1673 = vrot.slane %v1672, 1
        %v1674 = vadd.f32 %v1672, %v1673
        %v1675 = vsel %vm1613, %v1653, 0.0
        %v1676 = vrot.slane %v1675, 4
        %v1677 = vadd.f32 %v1675, %v1676
        %v1678 = vrot.slane %v1677, 2
        %v1679 = vadd.f32 %v1677, %v1678
        %v1680 = vrot.slane %v1679, 1
        %v1681 = vadd.f32 %v1679, %v1680
        %v1682 = vrcp.pop %v1660
        %v1683 = vmul.f32 %v1647, %v1682
        %v1684 = vrcp.pop %v1667
        %v1685 = vmul.f32 %v1649, %v1684
        %v1686 = vrcp.pop %v1674
        %v1687 = vmul.f32 %v1651, %v1686
        %v1688 = vrcp.pop %v1681
        %v1689 = vmul.f32 %v1653, %v1688
        %1690 = vxpose.xlu0.b32.start [1/16] %v1683, 128
        %1691 = vxpose.xlu0.b32.cont [2/16] 0.0, 128
        %1692 = vxpose.xlu0.b32.cont [3/16] 0.0, 128
        %1693 = vxpose.xlu0.b32.cont [4/16] 0.0, 128
        %1694 = vxpose.xlu0.b32.cont [5/16] 0.0, 128
        %1695 = vxpose.xlu0.b32.cont [6/16] 0.0, 128
        %1696 = vxpose.xlu0.b32.cont [7/16] 0.0, 128
        %1697 = vxpose.xlu0.b32.cont [8/16] 0.0, 128
        %1698 = vxpose.xlu0.b32.cont [9/16] 0.0, 128
        %1699 = vxpose.xlu0.b32.cont [10/16] 0.0, 128
        %1700 = vxpose.xlu0.b32.cont [11/16] 0.0, 128
        %1701 = vxpose.xlu0.b32.cont [12/16] 0.0, 128
        %1702 = vxpose.xlu0.b32.cont [13/16] 0.0, 128
        %1703 = vxpose.xlu0.b32.cont [14/16] 0.0, 128
        %1704 = vxpose.xlu0.b32.cont [15/16] 0.0, 128
        %1705 = vxpose.xlu0.b32.end [16/16] 0.0, 128
        %v1706 = vpop.trf.xlu0
        %v1707 = vpop.trf.xlu0
        %v1708 = vpop.trf.xlu0
        %v1709 = vpop.trf.xlu0
        %v1710 = vpop.trf.xlu0
        %v1711 = vpop.trf.xlu0
        %v1712 = vpop.trf.xlu0
        %v1713 = vpop.trf.xlu0
        %v1714 = vpop.trf.xlu0
        %v1715 = vpop.trf.xlu0
        %v1716 = vpop.trf.xlu0
        %v1717 = vpop.trf.xlu0
        %v1718 = vpop.trf.xlu0
        %v1719 = vpop.trf.xlu0
        %v1720 = vpop.trf.xlu0
        %v1721 = vpop.trf.xlu0
        %1722 = vxpose.xlu0.b32.start [1/16] %v1685, 128
        %1723 = vxpose.xlu0.b32.cont [2/16] 0.0, 128
        %1724 = vxpose.xlu0.b32.cont [3/16] 0.0, 128
        %1725 = vxpose.xlu0.b32.cont [4/16] 0.0, 128
        %1726 = vxpose.xlu0.b32.cont [5/16] 0.0, 128
        %1727 = vxpose.xlu0.b32.cont [6/16] 0.0, 128
        %1728 = vxpose.xlu0.b32.cont [7/16] 0.0, 128
        %1729 = vxpose.xlu0.b32.cont [8/16] 0.0, 128
        %1730 = vxpose.xlu0.b32.cont [9/16] 0.0, 128
        %1731 = vxpose.xlu0.b32.cont [10/16] 0.0, 128
        %1732 = vxpose.xlu0.b32.cont [11/16] 0.0, 128
        %1733 = vxpose.xlu0.b32.cont [12/16] 0.0, 128
        %1734 = vxpose.xlu0.b32.cont [13/16] 0.0, 128
        %1735 = vxpose.xlu0.b32.cont [14/16] 0.0, 128
        %1736 = vxpose.xlu0.b32.cont [15/16] 0.0, 128
        %1737 = vxpose.xlu0.b32.end [16/16] 0.0, 128
        %v1738 = vpop.trf.xlu0
        %v1739 = vpop.trf.xlu0
        %v1740 = vpop.trf.xlu0
        %v1741 = vpop.trf.xlu0
        %v1742 = vpop.trf.xlu0
        %v1743 = vpop.trf.xlu0
        %v1744 = vpop.trf.xlu0
        %v1745 = vpop.trf.xlu0
        %v1746 = vpop.trf.xlu0
        %v1747 = vpop.trf.xlu0
        %v1748 = vpop.trf.xlu0
        %v1749 = vpop.trf.xlu0
        %v1750 = vpop.trf.xlu0
        %v1751 = vpop.trf.xlu0
        %v1752 = vpop.trf.xlu0
        %v1753 = vpop.trf.xlu0
        %1754 = vxpose.xlu0.b32.start [1/16] %v1687, 128
        %1755 = vxpose.xlu0.b32.cont [2/16] 0.0, 128
        %1756 = vxpose.xlu0.b32.cont [3/16] 0.0, 128
        %1757 = vxpose.xlu0.b32.cont [4/16] 0.0, 128
        %1758 = vxpose.xlu0.b32.cont [5/16] 0.0, 128
        %1759 = vxpose.xlu0.b32.cont [6/16] 0.0, 128
        %1760 = vxpose.xlu0.b32.cont [7/16] 0.0, 128
        %1761 = vxpose.xlu0.b32.cont [8/16] 0.0, 128
        %1762 = vxpose.xlu0.b32.cont [9/16] 0.0, 128
        %1763 = vxpose.xlu0.b32.cont [10/16] 0.0, 128
        %1764 = vxpose.xlu0.b32.cont [11/16] 0.0, 128
        %1765 = vxpose.xlu0.b32.cont [12/16] 0.0, 128
        %1766 = vxpose.xlu0.b32.cont [13/16] 0.0, 128
        %1767 = vxpose.xlu0.b32.cont [14/16] 0.0, 128
        %1768 = vxpose.xlu0.b32.cont [15/16] 0.0, 128
        %1769 = vxpose.xlu0.b32.end [16/16] 0.0, 128
        %v1770 = vpop.trf.xlu0
        %v1771 = vpop.trf.xlu0
        %v1772 = vpop.trf.xlu0
        %v1773 = vpop.trf.xlu0
        %v1774 = vpop.trf.xlu0
        %v1775 = vpop.trf.xlu0
        %v1776 = vpop.trf.xlu0
        %v1777 = vpop.trf.xlu0
        %v1778 = vpop.trf.xlu0
        %v1779 = vpop.trf.xlu0
        %v1780 = vpop.trf.xlu0
        %v1781 = vpop.trf.xlu0
        %v1782 = vpop.trf.xlu0
        %v1783 = vpop.trf.xlu0
        %v1784 = vpop.trf.xlu0
        %v1785 = vpop.trf.xlu0
        %1786 = vxpose.xlu0.b32.start [1/16] %v1689, 128
        %1787 = vxpose.xlu0.b32.cont [2/16] 0.0, 128
        %1788 = vxpose.xlu0.b32.cont [3/16] 0.0, 128
        %1789 = vxpose.xlu0.b32.cont [4/16] 0.0, 128
        %1790 = vxpose.xlu0.b32.cont [5/16] 0.0, 128
        %1791 = vxpose.xlu0.b32.cont [6/16] 0.0, 128
        %1792 = vxpose.xlu0.b32.cont [7/16] 0.0, 128
        %1793 = vxpose.xlu0.b32.cont [8/16] 0.0, 128
        %1794 = vxpose.xlu0.b32.cont [9/16] 0.0, 128
        %1795 = vxpose.xlu0.b32.cont [10/16] 0.0, 128
        %1796 = vxpose.xlu0.b32.cont [11/16] 0.0, 128
        %1797 = vxpose.xlu0.b32.cont [12/16] 0.0, 128
        %1798 = vxpose.xlu0.b32.cont [13/16] 0.0, 128
        %1799 = vxpose.xlu0.b32.cont [14/16] 0.0, 128
        %1800 = vxpose.xlu0.b32.cont [15/16] 0.0, 128
        %1801 = vxpose.xlu0.b32.end [16/16] 0.0, 128
        %v1802 = vpop.trf.xlu0
        %v1803 = vpop.trf.xlu0
        %v1804 = vpop.trf.xlu0
        %v1805 = vpop.trf.xlu0
        %v1806 = vpop.trf.xlu0
        %v1807 = vpop.trf.xlu0
        %v1808 = vpop.trf.xlu0
        %v1809 = vpop.trf.xlu0
        %v1810 = vpop.trf.xlu0
        %v1811 = vpop.trf.xlu0
        %v1812 = vpop.trf.xlu0
        %v1813 = vpop.trf.xlu0
        %v1814 = vpop.trf.xlu0
        %v1815 = vpop.trf.xlu0
        %v1816 = vpop.trf.xlu0
        %v1817 = vpop.trf.xlu0
        %1818 = vst.msk [vmem:[%s172] sm:$0xff] %vm264, %v1706
        %1819 = vst.msk [vmem:[%s172 + $0x8] sm:$0xff] %vm264, %v1707
        %1820 = vst.msk [vmem:[%s172 + $0x10] sm:$0xff] %vm264, %v1708
        %1821 = vst.msk [vmem:[%s172 + $0x18] sm:$0xff] %vm264, %v1709
        %1822 = vst.msk [vmem:[%s172 + $0x20] sm:$0xff] %vm264, %v1710
        %1823 = vst.msk [vmem:[%s172 + $0x28] sm:$0xff] %vm264, %v1711
        %1824 = vst.msk [vmem:[%s172 + $0x30] sm:$0xff] %vm264, %v1712
        %1825 = vst.msk [vmem:[%s172 + $0x38] sm:$0xff] %vm264, %v1713
        %1826 = vst.msk [vmem:[%s172 + $0x40] sm:$0xff] %vm264, %v1714
        %1827 = vst.msk [vmem:[%s172 + $0x48] sm:$0xff] %vm264, %v1715
        %1828 = vst.msk [vmem:[%s172 + $0x50] sm:$0xff] %vm264, %v1716
        %1829 = vst.msk [vmem:[%s172 + $0x58] sm:$0xff] %vm264, %v1717
        %1830 = vst.msk [vmem:[%s172 + $0x60] sm:$0xff] %vm264, %v1718
        %1831 = vst.msk [vmem:[%s172 + $0x68] sm:$0xff] %vm264, %v1719
        %1832 = vst.msk [vmem:[%s172 + $0x70] sm:$0xff] %vm264, %v1720
        %1833 = vst.msk [vmem:[%s172 + $0x78] sm:$0xff] %vm264, %v1721
        %1834 = vst.msk [vmem:[%s172 + $0x80] sm:$0xff] %vm264, %v1738
        %1835 = vst.msk [vmem:[%s172 + $0x88] sm:$0xff] %vm264, %v1739
        %1836 = vst.msk [vmem:[%s172 + $0x90] sm:$0xff] %vm264, %v1740
        %1837 = vst.msk [vmem:[%s172 + $0x98] sm:$0xff] %vm264, %v1741
        %1838 = vst.msk [vmem:[%s172 + $0xa0] sm:$0xff] %vm264, %v1742
        %1839 = vst.msk [vmem:[%s172 + $0xa8] sm:$0xff] %vm264, %v1743
        %1840 = vst.msk [vmem:[%s172 + $0xb0] sm:$0xff] %vm264, %v1744
        %1841 = vst.msk [vmem:[%s172 + $0xb8] sm:$0xff] %vm264, %v1745
        %1842 = vst.msk [vmem:[%s172 + $0xc0] sm:$0xff] %vm264, %v1746
        %1843 = vst.msk [vmem:[%s172 + $0xc8] sm:$0xff] %vm264, %v1747
        %1844 = vst.msk [vmem:[%s172 + $0xd0] sm:$0xff] %vm264, %v1748
        %1845 = vst.msk [vmem:[%s172 + $0xd8] sm:$0xff] %vm264, %v1749
        %1846 = vst.msk [vmem:[%s172 + $0xe0] sm:$0xff] %vm264, %v1750
        %1847 = vst.msk [vmem:[%s172 + $0xe8] sm:$0xff] %vm264, %v1751
        %1848 = vst.msk [vmem:[%s172 + $0xf0] sm:$0xff] %vm264, %v1752
        %1849 = vst.msk [vmem:[%s172 + $0xf8] sm:$0xff] %vm264, %v1753
        %1850 = vst.msk [vmem:[%s172 + $0x100] sm:$0xff] %vm264, %v1770
        %1851 = vst.msk [vmem:[%s172 + $0x108] sm:$0xff] %vm264, %v1771
        %1852 = vst.msk [vmem:[%s172 + $0x110] sm:$0xff] %vm264, %v1772
        %1853 = vst.msk [vmem:[%s172 + $0x118] sm:$0xff] %vm264, %v1773
        %1854 = vst.msk [vmem:[%s172 + $0x120] sm:$0xff] %vm264, %v1774
        %1855 = vst.msk [vmem:[%s172 + $0x128] sm:$0xff] %vm264, %v1775
        %1856 = vst.msk [vmem:[%s172 + $0x130] sm:$0xff] %vm264, %v1776
        %1857 = vst.msk [vmem:[%s172 + $0x138] sm:$0xff] %vm264, %v1777
        %1858 = vst.msk [vmem:[%s172 + $0x140] sm:$0xff] %vm264, %v1778
        %1859 = vst.msk [vmem:[%s172 + $0x148] sm:$0xff] %vm264, %v1779
        %1860 = vst.msk [vmem:[%s172 + $0x150] sm:$0xff] %vm264, %v1780
        %1861 = vst.msk [vmem:[%s172 + $0x158] sm:$0xff] %vm264, %v1781
        %1862 = vst.msk [vmem:[%s172 + $0x160] sm:$0xff] %vm264, %v1782
        %1863 = vst.msk [vmem:[%s172 + $0x168] sm:$0xff] %vm264, %v1783
        %1864 = vst.msk [vmem:[%s172 + $0x170] sm:$0xff] %vm264, %v1784
        %1865 = vst.msk [vmem:[%s172 + $0x178] sm:$0xff] %vm264, %v1785
        %1866 = vst.msk [vmem:[%s172 + $0x180] sm:$0xff] %vm264, %v1802
        %1867 = vst.msk [vmem:[%s172 + $0x188] sm:$0xff] %vm264, %v1803
        %1868 = vst.msk [vmem:[%s172 + $0x190] sm:$0xff] %vm264, %v1804
        %1869 = vst.msk [vmem:[%s172 + $0x198] sm:$0xff] %vm264, %v1805
        %1870 = vst.msk [vmem:[%s172 + $0x1a0] sm:$0xff] %vm264, %v1806
        %1871 = vst.msk [vmem:[%s172 + $0x1a8] sm:$0xff] %vm264, %v1807
        %1872 = vst.msk [vmem:[%s172 + $0x1b0] sm:$0xff] %vm264, %v1808
        %1873 = vst.msk [vmem:[%s172 + $0x1b8] sm:$0xff] %vm264, %v1809
        %1874 = vst.msk [vmem:[%s172 + $0x1c0] sm:$0xff] %vm264, %v1810
        %1875 = vst.msk [vmem:[%s172 + $0x1c8] sm:$0xff] %vm264, %v1811
        %1876 = vst.msk [vmem:[%s172 + $0x1d0] sm:$0xff] %vm264, %v1812
        %1877 = vst.msk [vmem:[%s172 + $0x1d8] sm:$0xff] %vm264, %v1813
        %1878 = vst.msk [vmem:[%s172 + $0x1e0] sm:$0xff] %vm264, %v1814
        %1879 = vst.msk [vmem:[%s172 + $0x1e8] sm:$0xff] %vm264, %v1815
        %1880 = vst.msk [vmem:[%s172 + $0x1f0] sm:$0xff] %vm264, %v1816
        %1881 = vst.msk [vmem:[%s172 + $0x1f8] sm:$0xff] %vm264, %v1817
        %s1882 = sand.u32 %s90, 1
        %s1883 = sand.u32 %s90, 1
        %s1884 = smul.addr %s1883, 512
        %s1885 = scalar_lea.vmem [#allocation2], %s1884
        // Predicated region
        $region33: #{tpu_custom_call.1} parent=31 // pred_check
          %p1886 = pneg %p100
        $region34: #{tpu_custom_call.1} parent=31 // pred_check_branch
          %1888 = sbr.rel (%p1886) target = $region36
        $region35: #{tpu_custom_call.1} parent=31 // pred_region
          %s1889 = smul.u32 64, %s14
          %s1890 = ssub.s32 125, %s1889
          %p1891 = scmp.lt.s32.totalorder %s1890, 64
          %s1892 = scalar_select %p1891, %s1890, 64
          %s1893 = smul.u32 128, %s1892
          %p1894 = scmp.ne.s32.totalorder 0, %s1893
          %s1895 = smul.addr %s1889, 8
          %s1896 = scalar_lea.vmem %s3, %s1895
          // Predicated region
          $region37: #{tpu_custom_call.1} parent=35 // pred_check
            %p1897 = pneg %p1894
          $region38: #{tpu_custom_call.1} parent=35 // pred_check_branch
            %1899 = sbr.rel (%p1897) target = $region40
          $region39: #{tpu_custom_call.1} parent=35 // pred_region
            // Predicated region
            $region41: #{tpu_custom_call.1} parent=39 // pred_check
              _
            $region42: #{tpu_custom_call.1} parent=39 // pred_check_branch
              %1901 = sbr.rel (0) target = $region44
            $region43: #{tpu_custom_call.1} parent=39 // pred_region
              // Predicated region
              $region63: #{tpu_custom_call.1} parent=43 // pred_check
                _
              $region64: #{tpu_custom_call.1} parent=43 // pred_check_branch
                %2077 = sbr.rel (0) target = $region66
              $region65: #{tpu_custom_call.1} parent=43 // pred_region
                %s2078 = sshrl.u32 %s1892, 6
                // While loop
                $region67: #{tpu_custom_call.1} parent=65 // loop_pre_header
                  _
                $region68: #{tpu_custom_call.1} parent=65 // loop_header
                  %s2080 = sphi 0, %s2082
                  %p2081 = scmp.ge.s32.totalorder %s2080, %s2078
                  %s2085 = sphi 0, %s2218
                  %s2086 = sphi %s1885, %s2221
                  %s2087 = sphi %s1896, %s2222
                $region69: #{tpu_custom_call.1} parent=65 // loop_header_branch
                  %2084 = sbr.rel (%p2081) target = $region73
                $region70: #{tpu_custom_call.1} parent=65 // loop_body
                  %v2088 = vld [vmem:[%s2086] sm:$0xff]
                  %2089 = vst [vmem:[%s2087] sm:$0xff] %v2088
                  %v2090 = vld [vmem:[%s2086 + $0x8] sm:$0xff]
                  %2091 = vst [vmem:[%s2087 + $0x8] sm:$0xff] %v2090
                  %v2092 = vld [vmem:[%s2086 + $0x10] sm:$0xff]
                  %2093 = vst [vmem:[%s2087 + $0x10] sm:$0xff] %v2092
                  %v2094 = vld [vmem:[%s2086 + $0x18] sm:$0xff]
                  %2095 = vst [vmem:[%s2087 + $0x18] sm:$0xff] %v2094
                  %v2096 = vld [vmem:[%s2086 + $0x20] sm:$0xff]
                  %2097 = vst [vmem:[%s2087 + $0x20] sm:$0xff] %v2096
                  %v2098 = vld [vmem:[%s2086 + $0x28] sm:$0xff]
                  %2099 = vst [vmem:[%s2087 + $0x28] sm:$0xff] %v2098
                  %v2100 = vld [vmem:[%s2086 + $0x30] sm:$0xff]
                  %2101 = vst [vmem:[%s2087 + $0x30] sm:$0xff] %v2100
                  %v2102 = vld [vmem:[%s2086 + $0x38] sm:$0xff]
                  %2103 = vst [vmem:[%s2087 + $0x38] sm:$0xff] %v2102
                  %v2104 = vld [vmem:[%s2086 + $0x40] sm:$0xff]
                  %2105 = vst [vmem:[%s2087 + $0x40] sm:$0xff] %v2104
                  %v2106 = vld [vmem:[%s2086 + $0x48] sm:$0xff]
                  %2107 = vst [vmem:[%s2087 + $0x48] sm:$0xff] %v2106
                  %v2108 = vld [vmem:[%s2086 + $0x50] sm:$0xff]
                  %2109 = vst [vmem:[%s2087 + $0x50] sm:$0xff] %v2108
                  %v2110 = vld [vmem:[%s2086 + $0x58] sm:$0xff]
                  %2111 = vst [vmem:[%s2087 + $0x58] sm:$0xff] %v2110
                  %v2112 = vld [vmem:[%s2086 + $0x60] sm:$0xff]
                  %2113 = vst [vmem:[%s2087 + $0x60] sm:$0xff] %v2112
                  %v2114 = vld [vmem:[%s2086 + $0x68] sm:$0xff]
                  %2115 = vst [vmem:[%s2087 + $0x68] sm:$0xff] %v2114
                  %v2116 = vld [vmem:[%s2086 + $0x70] sm:$0xff]
                  %2117 = vst [vmem:[%s2087 + $0x70] sm:$0xff] %v2116
                  %v2118 = vld [vmem:[%s2086 + $0x78] sm:$0xff]
                  %2119 = vst [vmem:[%s2087 + $0x78] sm:$0xff] %v2118
                  %v2120 = vld [vmem:[%s2086 + $0x80] sm:$0xff]
                  %2121 = vst [vmem:[%s2087 + $0x80] sm:$0xff] %v2120
                  %v2122 = vld [vmem:[%s2086 + $0x88] sm:$0xff]
                  %2123 = vst [vmem:[%s2087 + $0x88] sm:$0xff] %v2122
                  %v2124 = vld [vmem:[%s2086 + $0x90] sm:$0xff]
                  %2125 = vst [vmem:[%s2087 + $0x90] sm:$0xff] %v2124
                  %v2126 = vld [vmem:[%s2086 + $0x98] sm:$0xff]
                  %2127 = vst [vmem:[%s2087 + $0x98] sm:$0xff] %v2126
                  %v2128 = vld [vmem:[%s2086 + $0xa0] sm:$0xff]
                  %2129 = vst [vmem:[%s2087 + $0xa0] sm:$0xff] %v2128
                  %v2130 = vld [vmem:[%s2086 + $0xa8] sm:$0xff]
                  %2131 = vst [vmem:[%s2087 + $0xa8] sm:$0xff] %v2130
                  %v2132 = vld [vmem:[%s2086 + $0xb0] sm:$0xff]
                  %2133 = vst [vmem:[%s2087 + $0xb0] sm:$0xff] %v2132
                  %v2134 = vld [vmem:[%s2086 + $0xb8] sm:$0xff]
                  %2135 = vst [vmem:[%s2087 + $0xb8] sm:$0xff] %v2134
                  %v2136 = vld [vmem:[%s2086 + $0xc0] sm:$0xff]
                  %2137 = vst [vmem:[%s2087 + $0xc0] sm:$0xff] %v2136
                  %v2138 = vld [vmem:[%s2086 + $0xc8] sm:$0xff]
                  %2139 = vst [vmem:[%s2087 + $0xc8] sm:$0xff] %v2138
                  %v2140 = vld [vmem:[%s2086 + $0xd0] sm:$0xff]
                  %2141 = vst [vmem:[%s2087 + $0xd0] sm:$0xff] %v2140
                  %v2142 = vld [vmem:[%s2086 + $0xd8] sm:$0xff]
                  %2143 = vst [vmem:[%s2087 + $0xd8] sm:$0xff] %v2142
                  %v2144 = vld [vmem:[%s2086 + $0xe0] sm:$0xff]
                  %2145 = vst [vmem:[%s2087 + $0xe0] sm:$0xff] %v2144
                  %v2146 = vld [vmem:[%s2086 + $0xe8] sm:$0xff]
                  %2147 = vst [vmem:[%s2087 + $0xe8] sm:$0xff] %v2146
                  %v2148 = vld [vmem:[%s2086 + $0xf0] sm:$0xff]
                  %2149 = vst [vmem:[%s2087 + $0xf0] sm:$0xff] %v2148
                  %v2150 = vld [vmem:[%s2086 + $0xf8] sm:$0xff]
                  %2151 = vst [vmem:[%s2087 + $0xf8] sm:$0xff] %v2150
                  %v2152 = vld [vmem:[%s2086 + $0x100] sm:$0xff]
                  %2153 = vst [vmem:[%s2087 + $0x100] sm:$0xff] %v2152
                  %v2154 = vld [vmem:[%s2086 + $0x108] sm:$0xff]
                  %2155 = vst [vmem:[%s2087 + $0x108] sm:$0xff] %v2154
                  %v2156 = vld [vmem:[%s2086 + $0x110] sm:$0xff]
                  %2157 = vst [vmem:[%s2087 + $0x110] sm:$0xff] %v2156
                  %v2158 = vld [vmem:[%s2086 + $0x118] sm:$0xff]
                  %2159 = vst [vmem:[%s2087 + $0x118] sm:$0xff] %v2158
                  %v2160 = vld [vmem:[%s2086 + $0x120] sm:$0xff]
                  %2161 = vst [vmem:[%s2087 + $0x120] sm:$0xff] %v2160
                  %v2162 = vld [vmem:[%s2086 + $0x128] sm:$0xff]
                  %2163 = vst [vmem:[%s2087 + $0x128] sm:$0xff] %v2162
                  %v2164 = vld [vmem:[%s2086 + $0x130] sm:$0xff]
                  %2165 = vst [vmem:[%s2087 + $0x130] sm:$0xff] %v2164
                  %v2166 = vld [vmem:[%s2086 + $0x138] sm:$0xff]
                  %2167 = vst [vmem:[%s2087 + $0x138] sm:$0xff] %v2166
                  %v2168 = vld [vmem:[%s2086 + $0x140] sm:$0xff]
                  %2169 = vst [vmem:[%s2087 + $0x140] sm:$0xff] %v2168
                  %v2170 = vld [vmem:[%s2086 + $0x148] sm:$0xff]
                  %2171 = vst [vmem:[%s2087 + $0x148] sm:$0xff] %v2170
                  %v2172 = vld [vmem:[%s2086 + $0x150] sm:$0xff]
                  %2173 = vst [vmem:[%s2087 + $0x150] sm:$0xff] %v2172
                  %v2174 = vld [vmem:[%s2086 + $0x158] sm:$0xff]
                  %2175 = vst [vmem:[%s2087 + $0x158] sm:$0xff] %v2174
                  %v2176 = vld [vmem:[%s2086 + $0x160] sm:$0xff]
                  %2177 = vst [vmem:[%s2087 + $0x160] sm:$0xff] %v2176
                  %v2178 = vld [vmem:[%s2086 + $0x168] sm:$0xff]
                  %2179 = vst [vmem:[%s2087 + $0x168] sm:$0xff] %v2178
                  %v2180 = vld [vmem:[%s2086 + $0x170] sm:$0xff]
                  %2181 = vst [vmem:[%s2087 + $0x170] sm:$0xff] %v2180
                  %v2182 = vld [vmem:[%s2086 + $0x178] sm:$0xff]
                  %2183 = vst [vmem:[%s2087 + $0x178] sm:$0xff] %v2182
                  %v2184 = vld [vmem:[%s2086 + $0x180] sm:$0xff]
                  %2185 = vst [vmem:[%s2087 + $0x180] sm:$0xff] %v2184
                  %v2186 = vld [vmem:[%s2086 + $0x188] sm:$0xff]
                  %2187 = vst [vmem:[%s2087 + $0x188] sm:$0xff] %v2186
                  %v2188 = vld [vmem:[%s2086 + $0x190] sm:$0xff]
                  %2189 = vst [vmem:[%s2087 + $0x190] sm:$0xff] %v2188
                  %v2190 = vld [vmem:[%s2086 + $0x198] sm:$0xff]
                  %2191 = vst [vmem:[%s2087 + $0x198] sm:$0xff] %v2190
                  %v2192 = vld [vmem:[%s2086 + $0x1a0] sm:$0xff]
                  %2193 = vst [vmem:[%s2087 + $0x1a0] sm:$0xff] %v2192
                  %v2194 = vld [vmem:[%s2086 + $0x1a8] sm:$0xff]
                  %2195 = vst [vmem:[%s2087 + $0x1a8] sm:$0xff] %v2194
                  %v2196 = vld [vmem:[%s2086 + $0x1b0] sm:$0xff]
                  %2197 = vst [vmem:[%s2087 + $0x1b0] sm:$0xff] %v2196
                  %v2198 = vld [vmem:[%s2086 + $0x1b8] sm:$0xff]
                  %2199 = vst [vmem:[%s2087 + $0x1b8] sm:$0xff] %v2198
                  %v2200 = vld [vmem:[%s2086 + $0x1c0] sm:$0xff]
                  %2201 = vst [vmem:[%s2087 + $0x1c0] sm:$0xff] %v2200
                  %v2202 = vld [vmem:[%s2086 + $0x1c8] sm:$0xff]
                  %2203 = vst [vmem:[%s2087 + $0x1c8] sm:$0xff] %v2202
                  %v2204 = vld [vmem:[%s2086 + $0x1d0] sm:$0xff]
                  %2205 = vst [vmem:[%s2087 + $0x1d0] sm:$0xff] %v2204
                  %v2206 = vld [vmem:[%s2086 + $0x1d8] sm:$0xff]
                  %2207 = vst [vmem:[%s2087 + $0x1d8] sm:$0xff] %v2206
                  %v2208 = vld [vmem:[%s2086 + $0x1e0] sm:$0xff]
                  %2209 = vst [vmem:[%s2087 + $0x1e0] sm:$0xff] %v2208
                  %v2210 = vld [vmem:[%s2086 + $0x1e8] sm:$0xff]
                  %2211 = vst [vmem:[%s2087 + $0x1e8] sm:$0xff] %v2210
                  %v2212 = vld [vmem:[%s2086 + $0x1f0] sm:$0xff]
                  %2213 = vst [vmem:[%s2087 + $0x1f0] sm:$0xff] %v2212
                  %v2214 = vld [vmem:[%s2086 + $0x1f8] sm:$0xff]
                  %2215 = vst [vmem:[%s2087 + $0x1f8] sm:$0xff] %v2214
                  %s2216 = sadd.s32 1, %s2085
                  %p2217 = scmp.ge.s32.totalorder %s2216, %s2078
                  %s2218 = scalar_select %p2217, 0, %s2216
                  %s2219 = smul.u32 %s2218, 512
                  %s2220 = smul.u32 %s2218, 512
                  %s2221 = scalar_lea.vmem %s1885, %s2219 [#allocation2]
                  %s2222 = scalar_lea.vmem %s1896, %s2220
                $region71: #{tpu_custom_call.1} parent=65 // loop_footer
                  %s2082 = sadd.s32 %s2080, 1
                $region72: #{tpu_custom_call.1} parent=65 // loop_footer_branch
                  %2079 = sbr.rel target = $region68
                $region73: #{tpu_custom_call.1} parent=65 // loop_exit
                  _
                %s2223 = sshrl.u32 %s1892, 6
                %s2224 = sand.u32 %s1892, 63
                %s2225 = smul.u32 %s2223, 64
                %s2226 = smul.u32 8, %s2225
                %s2227 = scalar_lea.vmem %s1885, %s2226 [#allocation2]
                %s2228 = smul.u32 8, %s2225
                %s2229 = scalar_lea.vmem %s1896, %s2228
                // While loop
                $region74: #{tpu_custom_call.1} parent=65 // loop_pre_header
                  _
                $region75: #{tpu_custom_call.1} parent=65 // loop_header
                  %s2231 = sphi 0, %s2233
                  %p2232 = scmp.ge.s32.totalorder %s2231, %s2224
                  %s2236 = sphi 0, %s2243
                  %s2237 = sphi %s2227, %s2246
                  %s2238 = sphi %s2229, %s2247
                $region76: #{tpu_custom_call.1} parent=65 // loop_header_branch
                  %2235 = sbr.rel (%p2232) target = $region80
                $region77: #{tpu_custom_call.1} parent=65 // loop_body
                  %v2239 = vld [vmem:[%s2237] sm:$0xff]
                  %2240 = vst [vmem:[%s2238] sm:$0xff] %v2239
                  %s2241 = sadd.s32 1, %s2236
                  %p2242 = scmp.ge.s32.totalorder %s2241, %s2224
                  %s2243 = scalar_select %p2242, 0, %s2241
                  %s2244 = smul.u32 %s2243, 8
                  %s2245 = smul.u32 %s2243, 8
                  %s2246 = scalar_lea.vmem %s2227, %s2244 [#allocation2]
                  %s2247 = scalar_lea.vmem %s2229, %s2245
                $region78: #{tpu_custom_call.1} parent=65 // loop_footer
                  %s2233 = sadd.s32 %s2231, 1
                $region79: #{tpu_custom_call.1} parent=65 // loop_footer_branch
                  %2230 = sbr.rel target = $region75
                $region80: #{tpu_custom_call.1} parent=65 // loop_exit
                  _
              $region66: #{tpu_custom_call.1} parent=43 // pred_fallthru
                _
              // Predicated region
              $region81: #{tpu_custom_call.1} parent=43 // pred_check
                _
              $region82: #{tpu_custom_call.1} parent=43 // pred_check_branch
                %2249 = sbr.rel target = $region84
              $region83: #{tpu_custom_call.1} parent=43 // pred_region
                _
              $region84: #{tpu_custom_call.1} parent=43 // pred_fallthru
                _
            $region44: #{tpu_custom_call.1} parent=39 // pred_fallthru
              _
            // Predicated region
            $region45: #{tpu_custom_call.1} parent=39 // pred_check
              _
            $region46: #{tpu_custom_call.1} parent=39 // pred_check_branch
              %1903 = sbr.rel target = $region48
            $region47: #{tpu_custom_call.1} parent=39 // pred_region
              %s1905 = ssub.s32 256, 1
              %s1906 = sshrl.u32 %s1892, 6
              // While loop
              $region49: #{tpu_custom_call.1} parent=47 // loop_pre_header
                _
              $region50: #{tpu_custom_call.1} parent=47 // loop_header
                %s1908 = sphi 0, %s1910
                %p1909 = scmp.ge.s32.totalorder %s1908, %s1906
                %s1913 = sphi 0, %s2046
                %s1914 = sphi %s1885, %s2049
                %s1915 = sphi %s1896, %s2050
              $region51: #{tpu_custom_call.1} parent=47 // loop_header_branch
                %1912 = sbr.rel (%p1909) target = $region55
              $region52: #{tpu_custom_call.1} parent=47 // loop_body
                %v1916 = vld [vmem:[%s1914] sm:%s1905]
                %1917 = vst [vmem:[%s1915] sm:%s1905] %v1916
                %v1918 = vld [vmem:[%s1914 + $0x8] sm:%s1905]
                %1919 = vst [vmem:[%s1915 + $0x8] sm:%s1905] %v1918
                %v1920 = vld [vmem:[%s1914 + $0x10] sm:%s1905]
                %1921 = vst [vmem:[%s1915 + $0x10] sm:%s1905] %v1920
                %v1922 = vld [vmem:[%s1914 + $0x18] sm:%s1905]
                %1923 = vst [vmem:[%s1915 + $0x18] sm:%s1905] %v1922
                %v1924 = vld [vmem:[%s1914 + $0x20] sm:%s1905]
                %1925 = vst [vmem:[%s1915 + $0x20] sm:%s1905] %v1924
                %v1926 = vld [vmem:[%s1914 + $0x28] sm:%s1905]
                %1927 = vst [vmem:[%s1915 + $0x28] sm:%s1905] %v1926
                %v1928 = vld [vmem:[%s1914 + $0x30] sm:%s1905]
                %1929 = vst [vmem:[%s1915 + $0x30] sm:%s1905] %v1928
                %v1930 = vld [vmem:[%s1914 + $0x38] sm:%s1905]
                %1931 = vst [vmem:[%s1915 + $0x38] sm:%s1905] %v1930
                %v1932 = vld [vmem:[%s1914 + $0x40] sm:%s1905]
                %1933 = vst [vmem:[%s1915 + $0x40] sm:%s1905] %v1932
                %v1934 = vld [vmem:[%s1914 + $0x48] sm:%s1905]
                %1935 = vst [vmem:[%s1915 + $0x48] sm:%s1905] %v1934
                %v1936 = vld [vmem:[%s1914 + $0x50] sm:%s1905]
                %1937 = vst [vmem:[%s1915 + $0x50] sm:%s1905] %v1936
                %v1938 = vld [vmem:[%s1914 + $0x58] sm:%s1905]
                %1939 = vst [vmem:[%s1915 + $0x58] sm:%s1905] %v1938
                %v1940 = vld [vmem:[%s1914 + $0x60] sm:%s1905]
                %1941 = vst [vmem:[%s1915 + $0x60] sm:%s1905] %v1940
                %v1942 = vld [vmem:[%s1914 + $0x68] sm:%s1905]
                %1943 = vst [vmem:[%s1915 + $0x68] sm:%s1905] %v1942
                %v1944 = vld [vmem:[%s1914 + $0x70] sm:%s1905]
                %1945 = vst [vmem:[%s1915 + $0x70] sm:%s1905] %v1944
                %v1946 = vld [vmem:[%s1914 + $0x78] sm:%s1905]
                %1947 = vst [vmem:[%s1915 + $0x78] sm:%s1905] %v1946
                %v1948 = vld [vmem:[%s1914 + $0x80] sm:%s1905]
                %1949 = vst [vmem:[%s1915 + $0x80] sm:%s1905] %v1948
                %v1950 = vld [vmem:[%s1914 + $0x88] sm:%s1905]
                %1951 = vst [vmem:[%s1915 + $0x88] sm:%s1905] %v1950
                %v1952 = vld [vmem:[%s1914 + $0x90] sm:%s1905]
                %1953 = vst [vmem:[%s1915 + $0x90] sm:%s1905] %v1952
                %v1954 = vld [vmem:[%s1914 + $0x98] sm:%s1905]
                %1955 = vst [vmem:[%s1915 + $0x98] sm:%s1905] %v1954
                %v1956 = vld [vmem:[%s1914 + $0xa0] sm:%s1905]
                %1957 = vst [vmem:[%s1915 + $0xa0] sm:%s1905] %v1956
                %v1958 = vld [vmem:[%s1914 + $0xa8] sm:%s1905]
                %1959 = vst [vmem:[%s1915 + $0xa8] sm:%s1905] %v1958
                %v1960 = vld [vmem:[%s1914 + $0xb0] sm:%s1905]
                %1961 = vst [vmem:[%s1915 + $0xb0] sm:%s1905] %v1960
                %v1962 = vld [vmem:[%s1914 + $0xb8] sm:%s1905]
                %1963 = vst [vmem:[%s1915 + $0xb8] sm:%s1905] %v1962
                %v1964 = vld [vmem:[%s1914 + $0xc0] sm:%s1905]
                %1965 = vst [vmem:[%s1915 + $0xc0] sm:%s1905] %v1964
                %v1966 = vld [vmem:[%s1914 + $0xc8] sm:%s1905]
                %1967 = vst [vmem:[%s1915 + $0xc8] sm:%s1905] %v1966
                %v1968 = vld [vmem:[%s1914 + $0xd0] sm:%s1905]
                %1969 = vst [vmem:[%s1915 + $0xd0] sm:%s1905] %v1968
                %v1970 = vld [vmem:[%s1914 + $0xd8] sm:%s1905]
                %1971 = vst [vmem:[%s1915 + $0xd8] sm:%s1905] %v1970
                %v1972 = vld [vmem:[%s1914 + $0xe0] sm:%s1905]
                %1973 = vst [vmem:[%s1915 + $0xe0] sm:%s1905] %v1972
                %v1974 = vld [vmem:[%s1914 + $0xe8] sm:%s1905]
                %1975 = vst [vmem:[%s1915 + $0xe8] sm:%s1905] %v1974
                %v1976 = vld [vmem:[%s1914 + $0xf0] sm:%s1905]
                %1977 = vst [vmem:[%s1915 + $0xf0] sm:%s1905] %v1976
                %v1978 = vld [vmem:[%s1914 + $0xf8] sm:%s1905]
                %1979 = vst [vmem:[%s1915 + $0xf8] sm:%s1905] %v1978
                %v1980 = vld [vmem:[%s1914 + $0x100] sm:%s1905]
                %1981 = vst [vmem:[%s1915 + $0x100] sm:%s1905] %v1980
                %v1982 = vld [vmem:[%s1914 + $0x108] sm:%s1905]
                %1983 = vst [vmem:[%s1915 + $0x108] sm:%s1905] %v1982
                %v1984 = vld [vmem:[%s1914 + $0x110] sm:%s1905]
                %1985 = vst [vmem:[%s1915 + $0x110] sm:%s1905] %v1984
                %v1986 = vld [vmem:[%s1914 + $0x118] sm:%s1905]
                %1987 = vst [vmem:[%s1915 + $0x118] sm:%s1905] %v1986
                %v1988 = vld [vmem:[%s1914 + $0x120] sm:%s1905]
                %1989 = vst [vmem:[%s1915 + $0x120] sm:%s1905] %v1988
                %v1990 = vld [vmem:[%s1914 + $0x128] sm:%s1905]
                %1991 = vst [vmem:[%s1915 + $0x128] sm:%s1905] %v1990
                %v1992 = vld [vmem:[%s1914 + $0x130] sm:%s1905]
                %1993 = vst [vmem:[%s1915 + $0x130] sm:%s1905] %v1992
                %v1994 = vld [vmem:[%s1914 + $0x138] sm:%s1905]
                %1995 = vst [vmem:[%s1915 + $0x138] sm:%s1905] %v1994
                %v1996 = vld [vmem:[%s1914 + $0x140] sm:%s1905]
                %1997 = vst [vmem:[%s1915 + $0x140] sm:%s1905] %v1996
                %v1998 = vld [vmem:[%s1914 + $0x148] sm:%s1905]
                %1999 = vst [vmem:[%s1915 + $0x148] sm:%s1905] %v1998
                %v2000 = vld [vmem:[%s1914 + $0x150] sm:%s1905]
                %2001 = vst [vmem:[%s1915 + $0x150] sm:%s1905] %v2000
                %v2002 = vld [vmem:[%s1914 + $0x158] sm:%s1905]
                %2003 = vst [vmem:[%s1915 + $0x158] sm:%s1905] %v2002
                %v2004 = vld [vmem:[%s1914 + $0x160] sm:%s1905]
                %2005 = vst [vmem:[%s1915 + $0x160] sm:%s1905] %v2004
                %v2006 = vld [vmem:[%s1914 + $0x168] sm:%s1905]
                %2007 = vst [vmem:[%s1915 + $0x168] sm:%s1905] %v2006
                %v2008 = vld [vmem:[%s1914 + $0x170] sm:%s1905]
                %2009 = vst [vmem:[%s1915 + $0x170] sm:%s1905] %v2008
                %v2010 = vld [vmem:[%s1914 + $0x178] sm:%s1905]
                %2011 = vst [vmem:[%s1915 + $0x178] sm:%s1905] %v2010
                %v2012 = vld [vmem:[%s1914 + $0x180] sm:%s1905]
                %2013 = vst [vmem:[%s1915 + $0x180] sm:%s1905] %v2012
                %v2014 = vld [vmem:[%s1914 + $0x188] sm:%s1905]
                %2015 = vst [vmem:[%s1915 + $0x188] sm:%s1905] %v2014
                %v2016 = vld [vmem:[%s1914 + $0x190] sm:%s1905]
                %2017 = vst [vmem:[%s1915 + $0x190] sm:%s1905] %v2016
                %v2018 = vld [vmem:[%s1914 + $0x198] sm:%s1905]
                %2019 = vst [vmem:[%s1915 + $0x198] sm:%s1905] %v2018
                %v2020 = vld [vmem:[%s1914 + $0x1a0] sm:%s1905]
                %2021 = vst [vmem:[%s1915 + $0x1a0] sm:%s1905] %v2020
                %v2022 = vld [vmem:[%s1914 + $0x1a8] sm:%s1905]
                %2023 = vst [vmem:[%s1915 + $0x1a8] sm:%s1905] %v2022
                %v2024 = vld [vmem:[%s1914 + $0x1b0] sm:%s1905]
                %2025 = vst [vmem:[%s1915 + $0x1b0] sm:%s1905] %v2024
                %v2026 = vld [vmem:[%s1914 + $0x1b8] sm:%s1905]
                %2027 = vst [vmem:[%s1915 + $0x1b8] sm:%s1905] %v2026
                %v2028 = vld [vmem:[%s1914 + $0x1c0] sm:%s1905]
                %2029 = vst [vmem:[%s1915 + $0x1c0] sm:%s1905] %v2028
                %v2030 = vld [vmem:[%s1914 + $0x1c8] sm:%s1905]
                %2031 = vst [vmem:[%s1915 + $0x1c8] sm:%s1905] %v2030
                %v2032 = vld [vmem:[%s1914 + $0x1d0] sm:%s1905]
                %2033 = vst [vmem:[%s1915 + $0x1d0] sm:%s1905] %v2032
                %v2034 = vld [vmem:[%s1914 + $0x1d8] sm:%s1905]
                %2035 = vst [vmem:[%s1915 + $0x1d8] sm:%s1905] %v2034
                %v2036 = vld [vmem:[%s1914 + $0x1e0] sm:%s1905]
                %2037 = vst [vmem:[%s1915 + $0x1e0] sm:%s1905] %v2036
                %v2038 = vld [vmem:[%s1914 + $0x1e8] sm:%s1905]
                %2039 = vst [vmem:[%s1915 + $0x1e8] sm:%s1905] %v2038
                %v2040 = vld [vmem:[%s1914 + $0x1f0] sm:%s1905]
                %2041 = vst [vmem:[%s1915 + $0x1f0] sm:%s1905] %v2040
                %v2042 = vld [vmem:[%s1914 + $0x1f8] sm:%s1905]
                %2043 = vst [vmem:[%s1915 + $0x1f8] sm:%s1905] %v2042
                %s2044 = sadd.s32 1, %s1913
                %p2045 = scmp.ge.s32.totalorder %s2044, %s1906
                %s2046 = scalar_select %p2045, 0, %s2044
                %s2047 = smul.u32 %s2046, 512
                %s2048 = smul.u32 %s2046, 512
                %s2049 = scalar_lea.vmem %s1885, %s2047 [#allocation2]
                %s2050 = scalar_lea.vmem %s1896, %s2048
              $region53: #{tpu_custom_call.1} parent=47 // loop_footer
                %s1910 = sadd.s32 %s1908, 1
              $region54: #{tpu_custom_call.1} parent=47 // loop_footer_branch
                %1907 = sbr.rel target = $region50
              $region55: #{tpu_custom_call.1} parent=47 // loop_exit
                _
              %s2051 = sshrl.u32 %s1892, 6
              %s2052 = sand.u32 %s1892, 63
              %s2053 = smul.u32 %s2051, 64
              %s2054 = smul.u32 8, %s2053
              %s2055 = scalar_lea.vmem %s1885, %s2054 [#allocation2]
              %s2056 = smul.u32 8, %s2053
              %s2057 = scalar_lea.vmem %s1896, %s2056
              // While loop
              $region56: #{tpu_custom_call.1} parent=47 // loop_pre_header
                _
              $region57: #{tpu_custom_call.1} parent=47 // loop_header
                %s2059 = sphi 0, %s2061
                %p2060 = scmp.ge.s32.totalorder %s2059, %s2052
                %s2064 = sphi 0, %s2071
                %s2065 = sphi %s2055, %s2074
                %s2066 = sphi %s2057, %s2075
              $region58: #{tpu_custom_call.1} parent=47 // loop_header_branch
                %2063 = sbr.rel (%p2060) target = $region62
              $region59: #{tpu_custom_call.1} parent=47 // loop_body
                %v2067 = vld [vmem:[%s2065] sm:%s1905]
                %2068 = vst [vmem:[%s2066] sm:%s1905] %v2067
                %s2069 = sadd.s32 1, %s2064
                %p2070 = scmp.ge.s32.totalorder %s2069, %s2052
                %s2071 = scalar_select %p2070, 0, %s2069
                %s2072 = smul.u32 %s2071, 8
                %s2073 = smul.u32 %s2071, 8
                %s2074 = scalar_lea.vmem %s2055, %s2072 [#allocation2]
                %s2075 = scalar_lea.vmem %s2057, %s2073
              $region60: #{tpu_custom_call.1} parent=47 // loop_footer
                %s2061 = sadd.s32 %s2059, 1
              $region61: #{tpu_custom_call.1} parent=47 // loop_footer_branch
                %2058 = sbr.rel target = $region57
              $region62: #{tpu_custom_call.1} parent=47 // loop_exit
                _
            $region48: #{tpu_custom_call.1} parent=39 // pred_fallthru
              _
          $region40: #{tpu_custom_call.1} parent=35 // pred_fallthru
            _
          %2250 = vnop
        $region36: #{tpu_custom_call.1} parent=31 // pred_fallthru
          _
      $region32: #{tpu_custom_call.1} parent=5 // pred_fallthru
        _
      %p2251 = scmp.le.s32.totalorder 2, %s9
      // Predicated region
      $region85: #{tpu_custom_call.1} parent=5 // pred_check
        %p2252 = pneg %p2251
      $region86: #{tpu_custom_call.1} parent=5 // pred_check_branch
        %2254 = sbr.rel (%p2252) target = $region88
      $region87: #{tpu_custom_call.1} parent=5 // pred_region
        %s2255 = ssub.s32 %s9, 2
        // Predicated region
        $region89: #{tpu_custom_call.1} parent=87 // pred_check
          %p2256 = pneg %p106
        $region90: #{tpu_custom_call.1} parent=87 // pred_check_branch
          %2258 = sbr.rel (%p2256) target = $region92
        $region91: #{tpu_custom_call.1} parent=87 // pred_region
          %s2259 = sand.u32 %s91, 1
          %s2260 = sand.u32 %s91, 1
          %s2261 = smul.addr %s2260, 512
          %s2262 = scalar_lea.vmem [#allocation2], %s2261
        $region92: #{tpu_custom_call.1} parent=87 // pred_fallthru
          _
      $region88: #{tpu_custom_call.1} parent=5 // pred_fallthru
        _
    $region6: #{tpu_custom_call.1} parent=1 // loop_footer
      %s13 = sadd.s32 1, %s9
    $region7: #{tpu_custom_call.1} parent=1 // loop_footer_branch
      %8 = sbr.rel target = $region3
    $region8: #{tpu_custom_call.1} parent=1 // loop_exit
      _

</llo_original>
